<compile_context>
chip_gen: v7x
topology: tpu7x:2x2x1
jax: 0.10.0
libtpu: 0.0.40
codegen_flags: <defaults>
</compile_context>

<pallas_src>
import jax
import jax.numpy as jnp
from jax.experimental import pallas as pl
from jax.experimental.pallas import tpu as pltpu


# ----------------------------- exact-erf GELU ---------------------------------

def _erf_approx(x):
    # Abramowitz & Stegun 7.1.26 (max abs err ~1.5e-7). Uses only exp +
    # arithmetic so it lowers cleanly inside Mosaic while keeping the exact-erf
    # GELU semantics of torch nn.GELU().
    a1, a2, a3, a4, a5 = (0.254829592, -0.284496736, 1.421413741,
                          -1.453152027, 1.061405429)
    p = 0.3275911
    ax = jnp.abs(x)
    t = 1.0 / (1.0 + p * ax)
    poly = ((((a5 * t + a4) * t + a3) * t + a2) * t + a1) * t
    y = 1.0 - poly * jnp.exp(-ax * ax)
    return jnp.where(x >= 0, y, -y)


def _gelu_exact(x):
    return 0.5 * x * (1.0 + _erf_approx(x * 0.7071067811865476))


# ------------------------------ Pallas kernel ---------------------------------

def _make_encoder_layer_kernel(S, C, cm, num_heads):
    """One fused post-norm transformer encoder layer for an (S, C) block."""
    D = C // num_heads
    eps = 1e-5
    bf16 = jnp.bfloat16

    def layer_norm(h, g, b):
        mu = jnp.mean(h, axis=-1, keepdims=True)
        var = jnp.mean((h - mu) ** 2, axis=-1, keepdims=True)
        return (h - mu) * jax.lax.rsqrt(var + eps) * g + b

    def kernel(x_ref, wqkv_ref, bqkv_ref, wo_ref, bo_ref,
               g1_ref, be1_ref, w1_ref, b1_ref, w2_ref, b2_ref,
               g2_ref, be2_ref, o_ref, attn_scratch):
        x = x_ref[0].astype(jnp.float32)                 # (S, C) residual, f32
        xb = x.astype(bf16)                              # bf16 MXU operand

        # ---- QKV projection: one wide (S,C)@(C,3C) bf16 matmul, f32 acc ----
        # (1/sqrt(D) is pre-folded into the Q columns of wqkv/bqkv host-side.)
        qkv = jnp.dot(xb, wqkv_ref[...],
                      preferred_element_type=jnp.float32) + bqkv_ref[...]

        # ---- Multi-head self-attention -------------------------------------
        # Head outputs go into an (S, C) VMEM scratch so the output projection
        # becomes a single full-depth matmul after the head loop.
        # TODO(synk): for realistic S, replace lane slices with head-major
        # layout + K/V streaming (online softmax) instead of a resident (S,S).
        for h in range(num_heads):
            qh = qkv[:, h * D:(h + 1) * D].astype(bf16)                # (S, D)
            kh = qkv[:, C + h * D:C + (h + 1) * D].astype(bf16)        # (S, D)
            vh = qkv[:, 2 * C + h * D:2 * C + (h + 1) * D].astype(bf16)
            s = jax.lax.dot_general(qh, kh, (((1,), (1,)), ((), ())),
                                    preferred_element_type=jnp.float32)  # (S,S)
            s = s - jnp.max(s, axis=-1, keepdims=True)
            p = jnp.exp(s)
            l = jnp.sum(p, axis=-1, keepdims=True)                     # (S, 1)
            oh = jnp.dot(p.astype(bf16), vh,
                         preferred_element_type=jnp.float32)           # (S, D)
            # Deferred softmax normalisation: scale the (S,D) head output by
            # the EUP approximate reciprocal instead of dividing (S,S) probs.
            attn_scratch[:, h * D:(h + 1) * D] = oh * pl.reciprocal(
                l, approx=True)

        # Single full-depth (S,C)@(C,C) output projection.
        attn = jnp.dot(attn_scratch[...].astype(bf16), wo_ref[...],
                       preferred_element_type=jnp.float32) + bo_ref[...]

        # ---- Residual + LayerNorm1 (f32 epilogue) ----
        h1 = layer_norm(x + attn, g1_ref[...], be1_ref[...])

        # ---- MLP: fc2(GELU(fc1(h1))), bf16 MXU operands ----
        # TODO(synk): tile over cm with an accumulator once S*cm outgrows VMEM.
        f = jnp.dot(h1.astype(bf16), w1_ref[...],
                    preferred_element_type=jnp.float32) + b1_ref[...]   # (S,cm)
        f = _gelu_exact(f)
        f = jnp.dot(f.astype(bf16), w2_ref[...],
                    preferred_element_type=jnp.float32) + b2_ref[...]   # (S,C)

        # ---- Residual + LayerNorm2 ----
        y = layer_norm(h1 + f, g2_ref[...], be2_ref[...])
        o_ref[0] = y.astype(o_ref.dtype)

    return kernel


# ------------------------- one-time parameter prep ----------------------------

def prepare_encoder_params(params, num_heads):
    """Hoisted out of the per-call path (perf feedback): transpose weights to
    x@W layout, fold 1/sqrt(D) into the Q projection, cast matmul weights to
    bf16 (halves DMA + VMEM), keep biases / LN affine params in f32."""
    c1 = params["out_proj_weight"].shape[0]
    cm = params["fc1_weight"].shape[0]
    D = c1 // num_heads
    scale = 1.0 / float(D) ** 0.5

    wqkv = jnp.transpose(params["in_proj_weight"])         # (C, 3C)
    bqkv = params["in_proj_bias"].reshape(1, 3 * c1)
    q_scale = jnp.concatenate([jnp.full((c1,), scale, jnp.float32),
                               jnp.ones((2 * c1,), jnp.float32)])
    wqkv = wqkv * q_scale[None, :]
    bqkv = bqkv * q_scale[None, :]

    return dict(
        wqkv=wqkv.astype(jnp.bfloat16),
        bqkv=bqkv,
        wo=jnp.transpose(params["out_proj_weight"]).astype(jnp.bfloat16),
        bo=params["out_proj_bias"].reshape(1, c1),
        g1=params["norm1_weight"].reshape(1, c1),
        be1=params["norm1_bias"].reshape(1, c1),
        w1=jnp.transpose(params["fc1_weight"]).astype(jnp.bfloat16),
        b1=params["fc1_bias"].reshape(1, cm),
        w2=jnp.transpose(params["fc2_weight"]).astype(jnp.bfloat16),
        b2=params["fc2_bias"].reshape(1, c1),
        g2=params["norm2_weight"].reshape(1, c1),
        be2=params["norm2_bias"].reshape(1, c1),
    )


# --------------------------------- Wrapper -------------------------------------

def _vmem_limit_bytes(S, C, cm):
    weights = (C * 3 * C + C * C + C * cm + cm * C) * 2     # bf16, single-buffered
    biases = (3 * C + 5 * C + cm) * 4
    io = 2 * 2 * S * C * 4                                  # src + out, double-buffered
    scratch = S * C * 4
    temps = (S * 3 * C + 2 * S * S + 4 * S * C + 2 * S * cm) * 4
    need = weights + biases + io + scratch + temps
    return min(100 << 20, max(32 << 20, int(1.5 * need) + (4 << 20)))


def transformer_encoder_layer(src, prepped, num_heads):
    """Fused Pallas forward of TransformerEncoderLayer.forward_post.

    src: (N, S, C) float32, batch_first layout.  `prepped` comes from
    prepare_encoder_params (weights already transposed / bf16 / scale-folded).
    """
    N, S, C = src.shape
    cm = prepped["w1"].shape[1]
    assert C % num_heads == 0

    kernel = _make_encoder_layer_kernel(S, C, cm, num_heads)

    def const2d(shape):
        # Constant across the grid -> single-buffered (default double-buffering
        # would hold two VMEM copies of every weight).
        return pl.BlockSpec(shape, lambda n: (0, 0),
                            pipeline_mode=pl.Buffered(1))

    in_specs = [
        pl.BlockSpec((1, S, C), lambda n: (n, 0, 0)),       # src
        const2d((C, 3 * C)), const2d((1, 3 * C)),           # wqkv, bqkv
        const2d((C, C)), const2d((1, C)),                   # wo, bo
        const2d((1, C)), const2d((1, C)),                   # norm1 gamma/beta
        const2d((C, cm)), const2d((1, cm)),                 # fc1
        const2d((cm, C)), const2d((1, C)),                  # fc2
        const2d((1, C)), const2d((1, C)),                   # norm2 gamma/beta
    ]

    # TODO(synk): add a second parallel grid axis over S tiles (with K/V
    # streaming) so odd/small N still fills both v7x TensorCores.
    return pl.pallas_call(
        kernel,
        out_shape=jax.ShapeDtypeStruct((N, S, C), src.dtype),
        grid=(N,),
        in_specs=in_specs,
        out_specs=pl.BlockSpec((1, S, C), lambda n: (n, 0, 0)),
        scratch_shapes=[pltpu.VMEM((S, C), jnp.float32)],
        compiler_params=pltpu.CompilerParams(
            dimension_semantics=("parallel",),
            vmem_limit_bytes=_vmem_limit_bytes(S, C, cm)),
    )(src, prepped["wqkv"], prepped["bqkv"], prepped["wo"], prepped["bo"],
      prepped["g1"], prepped["be1"], prepped["w1"], prepped["b1"],
      prepped["w2"], prepped["b2"], prepped["g2"], prepped["be2"])


# -------------------------- Parameter construction -----------------------------

def init_encoder_layer_params(key, c1, cm):
    ks = jax.random.split(key, 12)
    s = 0.1
    return {
        "in_proj_weight": s * jax.random.normal(ks[0], (3 * c1, c1), jnp.float32),
        "in_proj_bias": s * jax.random.normal(ks[1], (3 * c1,), jnp.float32),
        "out_proj_weight": s * jax.random.normal(ks[2], (c1, c1), jnp.float32),
        "out_proj_bias": s * jax.random.normal(ks[3], (c1,), jnp.float32),
        "fc1_weight": s * jax.random.normal(ks[4], (cm, c1), jnp.float32),
        "fc1_bias": s * jax.random.normal(ks[5], (cm,), jnp.float32),
        "fc2_weight": s * jax.random.normal(ks[6], (c1, cm), jnp.float32),
        "fc2_bias": s * jax.random.normal(ks[7], (c1,), jnp.float32),
        "norm1_weight": 1.0 + s * jax.random.normal(ks[8], (c1,), jnp.float32),
        "norm1_bias": s * jax.random.normal(ks[9], (c1,), jnp.float32),
        "norm2_weight": 1.0 + s * jax.random.normal(ks[10], (c1,), jnp.float32),
        "norm2_bias": s * jax.random.normal(ks[11], (c1,), jnp.float32),
    }


# -------------------------------- Reference ------------------------------------

def _layer_norm(x, g, b, eps=1e-5):
    mu = jnp.mean(x, axis=-1, keepdims=True)
    var = jnp.mean((x - mu) ** 2, axis=-1, keepdims=True)
    return (x - mu) * jax.lax.rsqrt(var + eps) * g + b


def reference_encoder_layer(src, params, num_heads):
    """Pure-JAX f32 reference matching torch forward_post (dropout=0, no masks)."""
    N, S, C = src.shape
    D = C // num_heads

    qkv = src @ params["in_proj_weight"].T + params["in_proj_bias"]
    q, k, v = jnp.split(qkv, 3, axis=-1)

    def heads(t):
        return t.reshape(N, S, num_heads, D).transpose(0, 2, 1, 3)

    q, k, v = heads(q), heads(k), heads(v)
    s = jnp.einsum("nhqd,nhkd->nhqk", q, k) / (float(D) ** 0.5)
    p = jax.nn.softmax(s, axis=-1)
    a = jnp.einsum("nhqk,nhkd->nhqd", p, v).transpose(0, 2, 1, 3).reshape(N, S, C)
    a = a @ params["out_proj_weight"].T + params["out_proj_bias"]

    h = _layer_norm(src + a, params["norm1_weight"], params["norm1_bias"])
    f = h @ params["fc1_weight"].T + params["fc1_bias"]
    f = 0.5 * f * (1.0 + jax.lax.erf(f * 0.7071067811865476))
    f = f @ params["fc2_weight"].T + params["fc2_bias"]
    return _layer_norm(h + f, params["norm2_weight"], params["norm2_bias"])


# ----------------------------------- Main ---------------------------------------

if __name__ == "__main__":
    key = jax.random.PRNGKey(0)
    k_x, k_p = jax.random.split(key)

    # Small but lane-dense shapes: C, cm multiples of 128 keep the output
    # store path unmasked and every matmul tile MXU-aligned (perf feedback).
    N, S, C, CM, HEADS = 2, 16, 128, 256, 4
    src = jax.random.normal(k_x, (N, S, C), jnp.float32)
    params = init_encoder_layer_params(k_p, c1=C, cm=CM)
    prepped = prepare_encoder_params(params, num_heads=HEADS)   # one-time prep

    out = jax.block_until_ready(
        transformer_encoder_layer(src, prepped, num_heads=HEADS))
    ref = jax.block_until_ready(
        reference_encoder_layer(src, params, num_heads=HEADS))

    assert out.shape == (N, S, C)
    max_err = float(jnp.max(jnp.abs(out - ref)))
    # Tolerance loosened vs the f32 reference: bf16 MXU operands + approximate
    # reciprocal in the softmax epilogue (expected, per perf review).
    assert bool(jnp.allclose(out, ref, atol=1e-1, rtol=1e-1)), max_err

    print("KERNEL_OK")
</pallas_src>

<mosaic_0001>
module attributes {stable_mosaic.version = 11 : i64} {
  func.func @kernel(%arg0: i32, %arg1: memref<1x16x128xf32, #tpu.memory_space<vmem>>, %arg2: memref<128x384xbf16, #tpu.memory_space<vmem>>, %arg3: memref<1x384xf32, #tpu.memory_space<vmem>>, %arg4: memref<128x128xbf16, #tpu.memory_space<vmem>>, %arg5: memref<1x128xf32, #tpu.memory_space<vmem>>, %arg6: memref<1x128xf32, #tpu.memory_space<vmem>>, %arg7: memref<1x128xf32, #tpu.memory_space<vmem>>, %arg8: memref<128x256xbf16, #tpu.memory_space<vmem>>, %arg9: memref<1x256xf32, #tpu.memory_space<vmem>>, %arg10: memref<256x128xbf16, #tpu.memory_space<vmem>>, %arg11: memref<1x128xf32, #tpu.memory_space<vmem>>, %arg12: memref<1x128xf32, #tpu.memory_space<vmem>>, %arg13: memref<1x128xf32, #tpu.memory_space<vmem>>, %arg14: memref<1x16x128xf32, #tpu.memory_space<vmem>>, %arg15: memref<16x128xf32, #tpu.memory_space<vmem>>) attributes {dimension_semantics = [#tpu.dimension_semantics<parallel>], iteration_bounds = array<i64: 2>, scalar_prefetch = 0 : i64, scratch_operands = 1 : i64, tpu.core_type = #tpu.core_type<tc>, window_params = [{transform_indices = @transform_0, window_bounds = array<i64: 1, 16, 128>}, {pipeline_mode = #tpu.pipeline_mode<synchronous>, transform_indices = @transform_1, window_bounds = array<i64: 128, 384>}, {pipeline_mode = #tpu.pipeline_mode<synchronous>, transform_indices = @transform_2, window_bounds = array<i64: 1, 384>}, {pipeline_mode = #tpu.pipeline_mode<synchronous>, transform_indices = @transform_3, window_bounds = array<i64: 128, 128>}, {pipeline_mode = #tpu.pipeline_mode<synchronous>, transform_indices = @transform_4, window_bounds = array<i64: 1, 128>}, {pipeline_mode = #tpu.pipeline_mode<synchronous>, transform_indices = @transform_5, window_bounds = array<i64: 1, 128>}, {pipeline_mode = #tpu.pipeline_mode<synchronous>, transform_indices = @transform_6, window_bounds = array<i64: 1, 128>}, {pipeline_mode = #tpu.pipeline_mode<synchronous>, transform_indices = @transform_7, window_bounds = array<i64: 128, 256>}, {pipeline_mode = #tpu.pipeline_mode<synchronous>, transform_indices = @transform_8, window_bounds = array<i64: 1, 256>}, {pipeline_mode = #tpu.pipeline_mode<synchronous>, transform_indices = @transform_9, window_bounds = array<i64: 256, 128>}, {pipeline_mode = #tpu.pipeline_mode<synchronous>, transform_indices = @transform_10, window_bounds = array<i64: 1, 128>}, {pipeline_mode = #tpu.pipeline_mode<synchronous>, transform_indices = @transform_11, window_bounds = array<i64: 1, 128>}, {pipeline_mode = #tpu.pipeline_mode<synchronous>, transform_indices = @transform_12, window_bounds = array<i64: 1, 128>}, {transform_indices = @transform_13, window_bounds = array<i64: 1, 16, 128>}]} {
    %c0 = arith.constant 0 : index
    %c0_0 = arith.constant 0 : index
    %c0_1 = arith.constant 0 : index
    %0 = vector.load %arg1[%c0, %c0_0, %c0_1] : memref<1x16x128xf32, #tpu.memory_space<vmem>>, vector<1x16x128xf32>
    %1 = vector.shape_cast %0 : vector<1x16x128xf32> to vector<16x128xf32>
    %2 = arith.truncf %1 : vector<16x128xf32> to vector<16x128xbf16>
    %c0_2 = arith.constant 0 : index
    %c0_3 = arith.constant 0 : index
    %3 = vector.load %arg2[%c0_2, %c0_3] : memref<128x384xbf16, #tpu.memory_space<vmem>>, vector<128x384xbf16>
    %cst = arith.constant dense<0.000000e+00> : vector<16x384xf32>
    %4 = tpu.matmul %2, %3, %cst {dimension_numbers = #tpu.dot_dimension_numbers<[1], [0], [0], [1], [0, 0, 1, 1], [], []>} : vector<16x128xbf16>, vector<128x384xbf16>, vector<16x384xf32> -> vector<16x384xf32>
    %c0_4 = arith.constant 0 : index
    %c0_5 = arith.constant 0 : index
    %5 = vector.load %arg3[%c0_4, %c0_5] : memref<1x384xf32, #tpu.memory_space<vmem>>, vector<1x384xf32>
    %6 = vector.broadcast %5 : vector<1x384xf32> to vector<16x384xf32>
    %7 = arith.addf %4, %6 : vector<16x384xf32>
    %8 = vector.extract_strided_slice %7 {offsets = [0, 0], sizes = [16, 32], strides = [1, 1]} : vector<16x384xf32> to vector<16x32xf32>
    %9 = arith.truncf %8 : vector<16x32xf32> to vector<16x32xbf16>
    %10 = vector.extract_strided_slice %7 {offsets = [0, 128], sizes = [16, 32], strides = [1, 1]} : vector<16x384xf32> to vector<16x32xf32>
    %11 = arith.truncf %10 : vector<16x32xf32> to vector<16x32xbf16>
    %12 = vector.extract_strided_slice %7 {offsets = [0, 256], sizes = [16, 32], strides = [1, 1]} : vector<16x384xf32> to vector<16x32xf32>
    %13 = arith.truncf %12 : vector<16x32xf32> to vector<16x32xbf16>
    %cst_6 = arith.constant dense<0.000000e+00> : vector<16x16xf32>
    %14 = tpu.matmul %9, %11, %cst_6 {dimension_numbers = #tpu.dot_dimension_numbers<[1], [1], [0], [0], [0, 0, 1, 0], [], []>} : vector<16x32xbf16>, vector<16x32xbf16>, vector<16x16xf32> -> vector<16x16xf32>
    %cst_7 = arith.constant dense<0xFF800000> : vector<16xf32>
    %15 = vector.multi_reduction <maximumf>, %14, %cst_7 [1] : vector<16x16xf32> to vector<16xf32>
    %16 = vector.shape_cast %15 : vector<16xf32> to vector<16x1xf32>
    %17 = vector.broadcast %16 : vector<16x1xf32> to vector<16x16xf32>
    %18 = arith.subf %14, %17 : vector<16x16xf32>
    %19 = math.exp %18 : vector<16x16xf32>
    %cst_8 = arith.constant dense<0.000000e+00> : vector<16xf32>
    %20 = vector.multi_reduction <add>, %19, %cst_8 [1] : vector<16x16xf32> to vector<16xf32>
    %21 = vector.shape_cast %20 : vector<16xf32> to vector<16x1xf32>
    %22 = arith.truncf %19 : vector<16x16xf32> to vector<16x16xbf16>
    %cst_9 = arith.constant dense<0.000000e+00> : vector<16x32xf32>
    %23 = tpu.matmul %22, %13, %cst_9 {dimension_numbers = #tpu.dot_dimension_numbers<[1], [0], [0], [1], [0, 0, 1, 1], [], []>} : vector<16x16xbf16>, vector<16x32xbf16>, vector<16x32xf32> -> vector<16x32xf32>
    %24 = tpu.reciprocal %21 {approx = true} : vector<16x1xf32> -> vector<16x1xf32>
    %25 = vector.broadcast %24 : vector<16x1xf32> to vector<16x32xf32>
    %26 = arith.mulf %23, %25 : vector<16x32xf32>
    %c0_10 = arith.constant 0 : index
    %c0_11 = arith.constant 0 : index
    %27 = vector.load %arg15[%c0_10, %c0_11] : memref<16x128xf32, #tpu.memory_space<vmem>>, vector<16x32xf32>
    tpu.vector_store %arg15[%c0_10, %c0_11], %26 {strides = array<i32>} : memref<16x128xf32, #tpu.memory_space<vmem>>, vector<16x32xf32>,
    %28 = vector.extract_strided_slice %7 {offsets = [0, 32], sizes = [16, 32], strides = [1, 1]} : vector<16x384xf32> to vector<16x32xf32>
    %29 = arith.truncf %28 : vector<16x32xf32> to vector<16x32xbf16>
    %30 = vector.extract_strided_slice %7 {offsets = [0, 160], sizes = [16, 32], strides = [1, 1]} : vector<16x384xf32> to vector<16x32xf32>
    %31 = arith.truncf %30 : vector<16x32xf32> to vector<16x32xbf16>
    %32 = vector.extract_strided_slice %7 {offsets = [0, 288], sizes = [16, 32], strides = [1, 1]} : vector<16x384xf32> to vector<16x32xf32>
    %33 = arith.truncf %32 : vector<16x32xf32> to vector<16x32xbf16>
    %cst_12 = arith.constant dense<0.000000e+00> : vector<16x16xf32>
    %34 = tpu.matmul %29, %31, %cst_12 {dimension_numbers = #tpu.dot_dimension_numbers<[1], [1], [0], [0], [0, 0, 1, 0], [], []>} : vector<16x32xbf16>, vector<16x32xbf16>, vector<16x16xf32> -> vector<16x16xf32>
    %cst_13 = arith.constant dense<0xFF800000> : vector<16xf32>
    %35 = vector.multi_reduction <maximumf>, %34, %cst_13 [1] : vector<16x16xf32> to vector<16xf32>
    %36 = vector.shape_cast %35 : vector<16xf32> to vector<16x1xf32>
    %37 = vector.broadcast %36 : vector<16x1xf32> to vector<16x16xf32>
    %38 = arith.subf %34, %37 : vector<16x16xf32>
    %39 = math.exp %38 : vector<16x16xf32>
    %cst_14 = arith.constant dense<0.000000e+00> : vector<16xf32>
    %40 = vector.multi_reduction <add>, %39, %cst_14 [1] : vector<16x16xf32> to vector<16xf32>
    %41 = vector.shape_cast %40 : vector<16xf32> to vector<16x1xf32>
    %42 = arith.truncf %39 : vector<16x16xf32> to vector<16x16xbf16>
    %cst_15 = arith.constant dense<0.000000e+00> : vector<16x32xf32>
    %43 = tpu.matmul %42, %33, %cst_15 {dimension_numbers = #tpu.dot_dimension_numbers<[1], [0], [0], [1], [0, 0, 1, 1], [], []>} : vector<16x16xbf16>, vector<16x32xbf16>, vector<16x32xf32> -> vector<16x32xf32>
    %44 = tpu.reciprocal %41 {approx = true} : vector<16x1xf32> -> vector<16x1xf32>
    %45 = vector.broadcast %44 : vector<16x1xf32> to vector<16x32xf32>
    %46 = arith.mulf %43, %45 : vector<16x32xf32>
    %c0_16 = arith.constant 0 : index
    %c32 = arith.constant 32 : index
    %47 = vector.load %arg15[%c0_16, %c32] : memref<16x128xf32, #tpu.memory_space<vmem>>, vector<16x32xf32>
    tpu.vector_store %arg15[%c0_16, %c32], %46 {strides = array<i32>} : memref<16x128xf32, #tpu.memory_space<vmem>>, vector<16x32xf32>,
    %48 = vector.extract_strided_slice %7 {offsets = [0, 64], sizes = [16, 32], strides = [1, 1]} : vector<16x384xf32> to vector<16x32xf32>
    %49 = arith.truncf %48 : vector<16x32xf32> to vector<16x32xbf16>
    %50 = vector.extract_strided_slice %7 {offsets = [0, 192], sizes = [16, 32], strides = [1, 1]} : vector<16x384xf32> to vector<16x32xf32>
    %51 = arith.truncf %50 : vector<16x32xf32> to vector<16x32xbf16>
    %52 = vector.extract_strided_slice %7 {offsets = [0, 320], sizes = [16, 32], strides = [1, 1]} : vector<16x384xf32> to vector<16x32xf32>
    %53 = arith.truncf %52 : vector<16x32xf32> to vector<16x32xbf16>
    %cst_17 = arith.constant dense<0.000000e+00> : vector<16x16xf32>
    %54 = tpu.matmul %49, %51, %cst_17 {dimension_numbers = #tpu.dot_dimension_numbers<[1], [1], [0], [0], [0, 0, 1, 0], [], []>} : vector<16x32xbf16>, vector<16x32xbf16>, vector<16x16xf32> -> vector<16x16xf32>
    %cst_18 = arith.constant dense<0xFF800000> : vector<16xf32>
    %55 = vector.multi_reduction <maximumf>, %54, %cst_18 [1] : vector<16x16xf32> to vector<16xf32>
    %56 = vector.shape_cast %55 : vector<16xf32> to vector<16x1xf32>
    %57 = vector.broadcast %56 : vector<16x1xf32> to vector<16x16xf32>
    %58 = arith.subf %54, %57 : vector<16x16xf32>
    %59 = math.exp %58 : vector<16x16xf32>
    %cst_19 = arith.constant dense<0.000000e+00> : vector<16xf32>
    %60 = vector.multi_reduction <add>, %59, %cst_19 [1] : vector<16x16xf32> to vector<16xf32>
    %61 = vector.shape_cast %60 : vector<16xf32> to vector<16x1xf32>
    %62 = arith.truncf %59 : vector<16x16xf32> to vector<16x16xbf16>
    %cst_20 = arith.constant dense<0.000000e+00> : vector<16x32xf32>
    %63 = tpu.matmul %62, %53, %cst_20 {dimension_numbers = #tpu.dot_dimension_numbers<[1], [0], [0], [1], [0, 0, 1, 1], [], []>} : vector<16x16xbf16>, vector<16x32xbf16>, vector<16x32xf32> -> vector<16x32xf32>
    %64 = tpu.reciprocal %61 {approx = true} : vector<16x1xf32> -> vector<16x1xf32>
    %65 = vector.broadcast %64 : vector<16x1xf32> to vector<16x32xf32>
    %66 = arith.mulf %63, %65 : vector<16x32xf32>
    %c0_21 = arith.constant 0 : index
    %c64 = arith.constant 64 : index
    %67 = vector.load %arg15[%c0_21, %c64] : memref<16x128xf32, #tpu.memory_space<vmem>>, vector<16x32xf32>
    tpu.vector_store %arg15[%c0_21, %c64], %66 {strides = array<i32>} : memref<16x128xf32, #tpu.memory_space<vmem>>, vector<16x32xf32>,
    %68 = vector.extract_strided_slice %7 {offsets = [0, 96], sizes = [16, 32], strides = [1, 1]} : vector<16x384xf32> to vector<16x32xf32>
    %69 = arith.truncf %68 : vector<16x32xf32> to vector<16x32xbf16>
    %70 = vector.extract_strided_slice %7 {offsets = [0, 224], sizes = [16, 32], strides = [1, 1]} : vector<16x384xf32> to vector<16x32xf32>
    %71 = arith.truncf %70 : vector<16x32xf32> to vector<16x32xbf16>
    %72 = vector.extract_strided_slice %7 {offsets = [0, 352], sizes = [16, 32], strides = [1, 1]} : vector<16x384xf32> to vector<16x32xf32>
    %73 = arith.truncf %72 : vector<16x32xf32> to vector<16x32xbf16>
    %cst_22 = arith.constant dense<0.000000e+00> : vector<16x16xf32>
    %74 = tpu.matmul %69, %71, %cst_22 {dimension_numbers = #tpu.dot_dimension_numbers<[1], [1], [0], [0], [0, 0, 1, 0], [], []>} : vector<16x32xbf16>, vector<16x32xbf16>, vector<16x16xf32> -> vector<16x16xf32>
    %cst_23 = arith.constant dense<0xFF800000> : vector<16xf32>
    %75 = vector.multi_reduction <maximumf>, %74, %cst_23 [1] : vector<16x16xf32> to vector<16xf32>
    %76 = vector.shape_cast %75 : vector<16xf32> to vector<16x1xf32>
    %77 = vector.broadcast %76 : vector<16x1xf32> to vector<16x16xf32>
    %78 = arith.subf %74, %77 : vector<16x16xf32>
    %79 = math.exp %78 : vector<16x16xf32>
    %cst_24 = arith.constant dense<0.000000e+00> : vector<16xf32>
    %80 = vector.multi_reduction <add>, %79, %cst_24 [1] : vector<16x16xf32> to vector<16xf32>
    %81 = vector.shape_cast %80 : vector<16xf32> to vector<16x1xf32>
    %82 = arith.truncf %79 : vector<16x16xf32> to vector<16x16xbf16>
    %cst_25 = arith.constant dense<0.000000e+00> : vector<16x32xf32>
    %83 = tpu.matmul %82, %73, %cst_25 {dimension_numbers = #tpu.dot_dimension_numbers<[1], [0], [0], [1], [0, 0, 1, 1], [], []>} : vector<16x16xbf16>, vector<16x32xbf16>, vector<16x32xf32> -> vector<16x32xf32>
    %84 = tpu.reciprocal %81 {approx = true} : vector<16x1xf32> -> vector<16x1xf32>
    %85 = vector.broadcast %84 : vector<16x1xf32> to vector<16x32xf32>
    %86 = arith.mulf %83, %85 : vector<16x32xf32>
    %c0_26 = arith.constant 0 : index
    %c96 = arith.constant 96 : index
    %87 = vector.load %arg15[%c0_26, %c96] : memref<16x128xf32, #tpu.memory_space<vmem>>, vector<16x32xf32>
    tpu.vector_store %arg15[%c0_26, %c96], %86 {strides = array<i32>} : memref<16x128xf32, #tpu.memory_space<vmem>>, vector<16x32xf32>,
    %c0_27 = arith.constant 0 : index
    %c0_28 = arith.constant 0 : index
    %88 = vector.load %arg15[%c0_27, %c0_28] : memref<16x128xf32, #tpu.memory_space<vmem>>, vector<16x128xf32>
    %89 = arith.truncf %88 : vector<16x128xf32> to vector<16x128xbf16>
    %c0_29 = arith.constant 0 : index
    %c0_30 = arith.constant 0 : index
    %90 = vector.load %arg4[%c0_29, %c0_30] : memref<128x128xbf16, #tpu.memory_space<vmem>>, vector<128x128xbf16>
    %cst_31 = arith.constant dense<0.000000e+00> : vector<16x128xf32>
    %91 = tpu.matmul %89, %90, %cst_31 {dimension_numbers = #tpu.dot_dimension_numbers<[1], [0], [0], [1], [0, 0, 1, 1], [], []>} : vector<16x128xbf16>, vector<128x128xbf16>, vector<16x128xf32> -> vector<16x128xf32>
    %c0_32 = arith.constant 0 : index
    %c0_33 = arith.constant 0 : index
    %92 = vector.load %arg5[%c0_32, %c0_33] : memref<1x128xf32, #tpu.memory_space<vmem>>, vector<1x128xf32>
    %93 = vector.broadcast %92 : vector<1x128xf32> to vector<16x128xf32>
    %94 = arith.addf %91, %93 : vector<16x128xf32>
    %95 = arith.addf %1, %94 : vector<16x128xf32>
    %c0_34 = arith.constant 0 : index
    %c0_35 = arith.constant 0 : index
    %96 = vector.load %arg6[%c0_34, %c0_35] : memref<1x128xf32, #tpu.memory_space<vmem>>, vector<1x128xf32>
    %c0_36 = arith.constant 0 : index
    %c0_37 = arith.constant 0 : index
    %97 = vector.load %arg7[%c0_36, %c0_37] : memref<1x128xf32, #tpu.memory_space<vmem>>, vector<1x128xf32>
    %cst_38 = arith.constant dense<0.000000e+00> : vector<16xf32>
    %98 = vector.multi_reduction <add>, %95, %cst_38 [1] : vector<16x128xf32> to vector<16xf32>
    %99 = vector.shape_cast %98 : vector<16xf32> to vector<16x1xf32>
    %cst_39 = arith.constant 1.280000e+02 : f32
    %100 = vector.broadcast %cst_39 : f32 to vector<16x1xf32>
    %101 = arith.divf %99, %100 : vector<16x1xf32>
    %102 = vector.broadcast %101 : vector<16x1xf32> to vector<16x128xf32>
    %103 = arith.subf %95, %102 : vector<16x128xf32>
    %104 = arith.mulf %103, %103 : vector<16x128xf32>
    %cst_40 = arith.constant dense<0.000000e+00> : vector<16xf32>
    %105 = vector.multi_reduction <add>, %104, %cst_40 [1] : vector<16x128xf32> to vector<16xf32>
    %106 = vector.shape_cast %105 : vector<16xf32> to vector<16x1xf32>
    %cst_41 = arith.constant 1.280000e+02 : f32
    %107 = vector.broadcast %cst_41 : f32 to vector<16x1xf32>
    %108 = arith.divf %106, %107 : vector<16x1xf32>
    %109 = vector.broadcast %101 : vector<16x1xf32> to vector<16x128xf32>
    %110 = arith.subf %95, %109 : vector<16x128xf32>
    %cst_42 = arith.constant 9.99999974E-6 : f32
    %111 = vector.broadcast %cst_42 : f32 to vector<16x1xf32>
    %112 = arith.addf %108, %111 : vector<16x1xf32>
    %113 = math.rsqrt %112 : vector<16x1xf32>
    %114 = vector.broadcast %113 : vector<16x1xf32> to vector<16x128xf32>
    %115 = arith.mulf %110, %114 : vector<16x128xf32>
    %116 = vector.broadcast %96 : vector<1x128xf32> to vector<16x128xf32>
    %117 = arith.mulf %115, %116 : vector<16x128xf32>
    %118 = vector.broadcast %97 : vector<1x128xf32> to vector<16x128xf32>
    %119 = arith.addf %117, %118 : vector<16x128xf32>
    %120 = arith.truncf %119 : vector<16x128xf32> to vector<16x128xbf16>
    %c0_43 = arith.constant 0 : index
    %c0_44 = arith.constant 0 : index
    %121 = vector.load %arg8[%c0_43, %c0_44] : memref<128x256xbf16, #tpu.memory_space<vmem>>, vector<128x256xbf16>
    %cst_45 = arith.constant dense<0.000000e+00> : vector<16x256xf32>
    %122 = tpu.matmul %120, %121, %cst_45 {dimension_numbers = #tpu.dot_dimension_numbers<[1], [0], [0], [1], [0, 0, 1, 1], [], []>} : vector<16x128xbf16>, vector<128x256xbf16>, vector<16x256xf32> -> vector<16x256xf32>
    %c0_46 = arith.constant 0 : index
    %c0_47 = arith.constant 0 : index
    %123 = vector.load %arg9[%c0_46, %c0_47] : memref<1x256xf32, #tpu.memory_space<vmem>>, vector<1x256xf32>
    %124 = vector.broadcast %123 : vector<1x256xf32> to vector<16x256xf32>
    %125 = arith.addf %122, %124 : vector<16x256xf32>
    %cst_48 = arith.constant 5.000000e-01 : f32
    %126 = vector.broadcast %cst_48 : f32 to vector<16x256xf32>
    %127 = arith.mulf %126, %125 : vector<16x256xf32>
    %cst_49 = arith.constant 0.707106769 : f32
    %128 = vector.broadcast %cst_49 : f32 to vector<16x256xf32>
    %129 = arith.mulf %125, %128 : vector<16x256xf32>
    %130 = math.absf %129 : vector<16x256xf32>
    %cst_50 = arith.constant 0.327591091 : f32
    %131 = vector.broadcast %cst_50 : f32 to vector<16x256xf32>
    %132 = arith.mulf %131, %130 : vector<16x256xf32>
    %cst_51 = arith.constant 1.000000e+00 : f32
    %133 = vector.broadcast %cst_51 : f32 to vector<16x256xf32>
    %134 = arith.addf %133, %132 : vector<16x256xf32>
    %cst_52 = arith.constant 1.000000e+00 : f32
    %135 = vector.broadcast %cst_52 : f32 to vector<16x256xf32>
    %136 = arith.divf %135, %134 : vector<16x256xf32>
    %cst_53 = arith.constant 1.06140542 : f32
    %137 = vector.broadcast %cst_53 : f32 to vector<16x256xf32>
    %138 = arith.mulf %137, %136 : vector<16x256xf32>
    %cst_54 = arith.constant -1.45315206 : f32
    %139 = vector.broadcast %cst_54 : f32 to vector<16x256xf32>
    %140 = arith.addf %138, %139 : vector<16x256xf32>
    %141 = arith.mulf %140, %136 : vector<16x256xf32>
    %cst_55 = arith.constant 1.42141378 : f32
    %142 = vector.broadcast %cst_55 : f32 to vector<16x256xf32>
    %143 = arith.addf %141, %142 : vector<16x256xf32>
    %144 = arith.mulf %143, %136 : vector<16x256xf32>
    %cst_56 = arith.constant -0.284496725 : f32
    %145 = vector.broadcast %cst_56 : f32 to vector<16x256xf32>
    %146 = arith.addf %144, %145 : vector<16x256xf32>
    %147 = arith.mulf %146, %136 : vector<16x256xf32>
    %cst_57 = arith.constant 0.254829586 : f32
    %148 = vector.broadcast %cst_57 : f32 to vector<16x256xf32>
    %149 = arith.addf %147, %148 : vector<16x256xf32>
    %150 = arith.mulf %149, %136 : vector<16x256xf32>
    %cst_58 = arith.constant 0.000000e+00 : f32
    %151 = vector.broadcast %cst_58 : f32 to vector<16x256xf32>
    %152 = arith.subf %151, %130 : vector<16x256xf32>
    %153 = arith.mulf %152, %130 : vector<16x256xf32>
    %154 = math.exp %153 : vector<16x256xf32>
    %155 = arith.mulf %150, %154 : vector<16x256xf32>
    %cst_59 = arith.constant 1.000000e+00 : f32
    %156 = vector.broadcast %cst_59 : f32 to vector<16x256xf32>
    %157 = arith.subf %156, %155 : vector<16x256xf32>
    %cst_60 = arith.constant 0.000000e+00 : f32
    %158 = vector.broadcast %cst_60 : f32 to vector<16x256xf32>
    %159 = arith.cmpf oge, %129, %158 : vector<16x256xf32>
    %cst_61 = arith.constant 0.000000e+00 : f32
    %160 = vector.broadcast %cst_61 : f32 to vector<16x256xf32>
    %161 = arith.subf %160, %157 : vector<16x256xf32>
    %162 = arith.select %159, %157, %161 : vector<16x256xi1>, vector<16x256xf32>
    %cst_62 = arith.constant 1.000000e+00 : f32
    %163 = vector.broadcast %cst_62 : f32 to vector<16x256xf32>
    %164 = arith.addf %163, %162 : vector<16x256xf32>
    %165 = arith.mulf %127, %164 : vector<16x256xf32>
    %166 = arith.truncf %165 : vector<16x256xf32> to vector<16x256xbf16>
    %c0_63 = arith.constant 0 : index
    %c0_64 = arith.constant 0 : index
    %167 = vector.load %arg10[%c0_63, %c0_64] : memref<256x128xbf16, #tpu.memory_space<vmem>>, vector<256x128xbf16>
    %cst_65 = arith.constant dense<0.000000e+00> : vector<16x128xf32>
    %168 = tpu.matmul %166, %167, %cst_65 {dimension_numbers = #tpu.dot_dimension_numbers<[1], [0], [0], [1], [0, 0, 1, 1], [], []>} : vector<16x256xbf16>, vector<256x128xbf16>, vector<16x128xf32> -> vector<16x128xf32>
    %c0_66 = arith.constant 0 : index
    %c0_67 = arith.constant 0 : index
    %169 = vector.load %arg11[%c0_66, %c0_67] : memref<1x128xf32, #tpu.memory_space<vmem>>, vector<1x128xf32>
    %170 = vector.broadcast %169 : vector<1x128xf32> to vector<16x128xf32>
    %171 = arith.addf %168, %170 : vector<16x128xf32>
    %172 = arith.addf %119, %171 : vector<16x128xf32>
    %c0_68 = arith.constant 0 : index
    %c0_69 = arith.constant 0 : index
    %173 = vector.load %arg12[%c0_68, %c0_69] : memref<1x128xf32, #tpu.memory_space<vmem>>, vector<1x128xf32>
    %c0_70 = arith.constant 0 : index
    %c0_71 = arith.constant 0 : index
    %174 = vector.load %arg13[%c0_70, %c0_71] : memref<1x128xf32, #tpu.memory_space<vmem>>, vector<1x128xf32>
    %cst_72 = arith.constant dense<0.000000e+00> : vector<16xf32>
    %175 = vector.multi_reduction <add>, %172, %cst_72 [1] : vector<16x128xf32> to vector<16xf32>
    %176 = vector.shape_cast %175 : vector<16xf32> to vector<16x1xf32>
    %cst_73 = arith.constant 1.280000e+02 : f32
    %177 = vector.broadcast %cst_73 : f32 to vector<16x1xf32>
    %178 = arith.divf %176, %177 : vector<16x1xf32>
    %179 = vector.broadcast %178 : vector<16x1xf32> to vector<16x128xf32>
    %180 = arith.subf %172, %179 : vector<16x128xf32>
    %181 = arith.mulf %180, %180 : vector<16x128xf32>
    %cst_74 = arith.constant dense<0.000000e+00> : vector<16xf32>
    %182 = vector.multi_reduction <add>, %181, %cst_74 [1] : vector<16x128xf32> to vector<16xf32>
    %183 = vector.shape_cast %182 : vector<16xf32> to vector<16x1xf32>
    %cst_75 = arith.constant 1.280000e+02 : f32
    %184 = vector.broadcast %cst_75 : f32 to vector<16x1xf32>
    %185 = arith.divf %183, %184 : vector<16x1xf32>
    %186 = vector.broadcast %178 : vector<16x1xf32> to vector<16x128xf32>
    %187 = arith.subf %172, %186 : vector<16x128xf32>
    %cst_76 = arith.constant 9.99999974E-6 : f32
    %188 = vector.broadcast %cst_76 : f32 to vector<16x1xf32>
    %189 = arith.addf %185, %188 : vector<16x1xf32>
    %190 = math.rsqrt %189 : vector<16x1xf32>
    %191 = vector.broadcast %190 : vector<16x1xf32> to vector<16x128xf32>
    %192 = arith.mulf %187, %191 : vector<16x128xf32>
    %193 = vector.broadcast %173 : vector<1x128xf32> to vector<16x128xf32>
    %194 = arith.mulf %192, %193 : vector<16x128xf32>
    %195 = vector.broadcast %174 : vector<1x128xf32> to vector<16x128xf32>
    %196 = arith.addf %194, %195 : vector<16x128xf32>
    %c0_77 = arith.constant 0 : index
    %c0_78 = arith.constant 0 : index
    %c0_79 = arith.constant 0 : index
    %197 = vector.load %arg14[%c0_77, %c0_78, %c0_79] : memref<1x16x128xf32, #tpu.memory_space<vmem>>, vector<1x16x128xf32>
    %198 = vector.shape_cast %197 : vector<1x16x128xf32> to vector<16x128xf32>
    %199 = vector.shape_cast %196 : vector<16x128xf32> to vector<1x16x128xf32>
    tpu.vector_store %arg14[%c0_77, %c0_78, %c0_79], %199 {strides = array<i32>} : memref<1x16x128xf32, #tpu.memory_space<vmem>>, vector<1x16x128xf32>,
    return
  }
  func.func @transform_0(%arg0: i32) -> (i32, i32, i32) {
    %c0_i32 = arith.constant 0 : i32
    %c0_i32_0 = arith.constant 0 : i32
    %c0_i32_1 = arith.constant 0 : i32
    return %arg0, %c0_i32, %c0_i32_0 : i32, i32, i32
  }
  func.func @transform_1(%arg0: i32) -> (i32, i32) {
    %c0_i32 = arith.constant 0 : i32
    %c0_i32_0 = arith.constant 0 : i32
    %c0_i32_1 = arith.constant 0 : i32
    return %c0_i32, %c0_i32_0 : i32, i32
  }
  func.func @transform_2(%arg0: i32) -> (i32, i32) {
    %c0_i32 = arith.constant 0 : i32
    %c0_i32_0 = arith.constant 0 : i32
    %c0_i32_1 = arith.constant 0 : i32
    return %c0_i32, %c0_i32_0 : i32, i32
  }
  func.func @transform_3(%arg0: i32) -> (i32, i32) {
    %c0_i32 = arith.constant 0 : i32
    %c0_i32_0 = arith.constant 0 : i32
    %c0_i32_1 = arith.constant 0 : i32
    return %c0_i32, %c0_i32_0 : i32, i32
  }
  func.func @transform_4(%arg0: i32) -> (i32, i32) {
    %c0_i32 = arith.constant 0 : i32
    %c0_i32_0 = arith.constant 0 : i32
    %c0_i32_1 = arith.constant 0 : i32
    return %c0_i32, %c0_i32_0 : i32, i32
  }
  func.func @transform_5(%arg0: i32) -> (i32, i32) {
    %c0_i32 = arith.constant 0 : i32
    %c0_i32_0 = arith.constant 0 : i32
    %c0_i32_1 = arith.constant 0 : i32
    return %c0_i32, %c0_i32_0 : i32, i32
  }
  func.func @transform_6(%arg0: i32) -> (i32, i32) {
    %c0_i32 = arith.constant 0 : i32
    %c0_i32_0 = arith.constant 0 : i32
    %c0_i32_1 = arith.constant 0 : i32
    return %c0_i32, %c0_i32_0 : i32, i32
  }
  func.func @transform_7(%arg0: i32) -> (i32, i32) {
    %c0_i32 = arith.constant 0 : i32
    %c0_i32_0 = arith.constant 0 : i32
    %c0_i32_1 = arith.constant 0 : i32
    return %c0_i32, %c0_i32_0 : i32, i32
  }
  func.func @transform_8(%arg0: i32) -> (i32, i32) {
    %c0_i32 = arith.constant 0 : i32
    %c0_i32_0 = arith.constant 0 : i32
    %c0_i32_1 = arith.constant 0 : i32
    return %c0_i32, %c0_i32_0 : i32, i32
  }
  func.func @transform_9(%arg0: i32) -> (i32, i32) {
    %c0_i32 = arith.constant 0 : i32
    %c0_i32_0 = arith.constant 0 : i32
    %c0_i32_1 = arith.constant 0 : i32
    return %c0_i32, %c0_i32_0 : i32, i32
  }
  func.func @transform_10(%arg0: i32) -> (i32, i32) {
    %c0_i32 = arith.constant 0 : i32
    %c0_i32_0 = arith.constant 0 : i32
    %c0_i32_1 = arith.constant 0 : i32
    return %c0_i32, %c0_i32_0 : i32, i32
  }
  func.func @transform_11(%arg0: i32) -> (i32, i32) {
    %c0_i32 = arith.constant 0 : i32
    %c0_i32_0 = arith.constant 0 : i32
    %c0_i32_1 = arith.constant 0 : i32
    return %c0_i32, %c0_i32_0 : i32, i32
  }
  func.func @transform_12(%arg0: i32) -> (i32, i32) {
    %c0_i32 = arith.constant 0 : i32
    %c0_i32_0 = arith.constant 0 : i32
    %c0_i32_1 = arith.constant 0 : i32
    return %c0_i32, %c0_i32_0 : i32, i32
  }
  func.func @transform_13(%arg0: i32) -> (i32, i32, i32) {
    %c0_i32 = arith.constant 0 : i32
    %c0_i32_0 = arith.constant 0 : i32
    %c0_i32_1 = arith.constant 0 : i32
    return %arg0, %c0_i32, %c0_i32_0 : i32, i32, i32
  }
}

</mosaic_0001>

<llo_original>
// kernel: tpu_custom_call.1
$region0: #{tpu_custom_call.1}
  #allocation0 [shape = 'u32[]', space=smem, size = 0x4, offset = 0x4, fixed_abs, tag = 'smem constant byte address 0x4 - core index']
  #allocation1 [shape = 'u32[144,128]{1,0:T(1,128)}', space=vmem, size = 0x12000, scoped, tag = 'internal scratch']
  #allocation2 [shape = 'f32[16,128]{1,0:T(8,128)}', space=vmem, size = 0x2000, scoped, tag = 'scratch operand']
  %s0 = inlined_call_operand.hbm [shape: f32[2,16,128], index: 0, kind: input, shape index: {}]
  %s1 = inlined_call_operand.hbm [shape: bf16[128,384], index: 1, kind: input, shape index: {}]
  %s2 = inlined_call_operand.vmem [shape: f32[1,384], index: 2, kind: input, shape index: {}]
  %s3 = inlined_call_operand.hbm [shape: bf16[128,128], index: 3, kind: input, shape index: {}]
  %s4 = inlined_call_operand.vmem [shape: f32[1,128], index: 4, kind: input, shape index: {}]
  %s5 = inlined_call_operand.vmem [shape: f32[1,128], index: 5, kind: input, shape index: {}]
  %s6 = inlined_call_operand.vmem [shape: f32[1,128], index: 6, kind: input, shape index: {}]
  %s7 = inlined_call_operand.hbm [shape: bf16[128,256], index: 7, kind: input, shape index: {}]
  %s8 = inlined_call_operand.vmem [shape: f32[1,256], index: 8, kind: input, shape index: {}]
  %s9 = inlined_call_operand.hbm [shape: bf16[256,128], index: 9, kind: input, shape index: {}]
  %s10 = inlined_call_operand.vmem [shape: f32[1,128], index: 10, kind: input, shape index: {}]
  %s11 = inlined_call_operand.vmem [shape: f32[1,128], index: 11, kind: input, shape index: {}]
  %s12 = inlined_call_operand.vmem [shape: f32[1,128], index: 12, kind: input, shape index: {}]
  %s13 = inlined_call_operand.hbm [shape: f32[2,16,128], index: 13, kind: output, shape index: {}]
  %s14 = sld [smem:[#allocation0]]
  $region105: #{tpu_custom_call.1} parent=0
    _
  %s16 = ssub.s32 1, %s14
  %s17 = scalar_select 0, %s16, %s14
  $region1: #{tpu_custom_call.1} parent=0
    #allocation3 [shape = 'u8[16384]{0}', space=vmem, size = 0x4000, scoped, tag = 'input window, operand 0']
    #allocation4 [shape = 's32[2]{0}', space=sflag, size = 0x8, scoped, tag = 'scoped memory for tpu_custom_call.1']
    #allocation5 [shape = 's32[2]{0}', space=sflag, size = 0x8, scoped, tag = 'scoped memory for tpu_custom_call.1']
    #allocation6 [shape = 'u8[98304]{0}', space=vmem, size = 0x18000, scoped, tag = 'input window, operand 1, single buffered']
    #allocation7 [shape = 's32[1]{0}', space=sflag, size = 0x4, scoped, tag = 'scoped memory for tpu_custom_call.1']
    #allocation8 [shape = 'u8[32768]{0}', space=vmem, size = 0x8000, scoped, tag = 'input window, operand 3, single buffered']
    #allocation9 [shape = 'u8[65536]{0}', space=vmem, size = 0x10000, scoped, tag = 'input window, operand 7, single buffered']
    #allocation10 [shape = 's32[1]{0}', space=sflag, size = 0x4, scoped, tag = 'scoped memory for tpu_custom_call.1']
    #allocation11 [shape = 'u8[65536]{0}', space=vmem, size = 0x10000, scoped, tag = 'input window, operand 9, single buffered']
    #allocation12 [shape = 'u8[16384]{0}', space=vmem, size = 0x4000, scoped, tag = 'output window, operand 0']
    %18 = vsyncpa [#allocation4], 0
    %s19 = scalar_lea.sflag [#allocation4], 1
    %20 = vsyncpa %s19, 0
    %21 = vsyncpa [#allocation7], 0
    %22 = vsyncpa [#allocation10], 0
    %23 = vsyncpa [#allocation5], 0
    %s24 = scalar_lea.sflag [#allocation5], 1
    %25 = vsyncpa %s24, 0
    loop: start=0, step=1, limit=4
    $region2: #{tpu_custom_call.1} parent=1 // loop_pre_header
      _
    $region3: #{tpu_custom_call.1} parent=1 // loop_header
      %s27 = sphi 0, %s31
      %p28 = scmp.ge.s32.totalorder %s27, 4
      %s37 = sphi 0, %s39
      %s40 = sphi 0, %s37
      %s41 = sphi 0, %s40
      %s57 = sphi 0, %s41
      %s61 = sphi 0, %s61
      %s63 = sphi 0, %s61
      %s64 = sphi 0, %s63
      %s78 = sphi 0, %s64
      %s82 = sphi 0, %s82
      %s84 = sphi 0, %s82
      %s85 = sphi 0, %s84
      %s99 = sphi 0, %s85
      %s103 = sphi 0, %s103
      %s105 = sphi 0, %s103
      %s106 = sphi 0, %s105
      %s120 = sphi 0, %s106
      %s124 = sphi 0, %s124
      %s126 = sphi 0, %s124
      %s127 = sphi 0, %s126
      %s141 = sphi 0, %s127
      %s145 = sphi 0, %s145
      %s147 = sphi 0, %s145
      %s148 = sphi 0, %s147
      %s162 = sphi 0, %s148
      %s166 = sphi 0, %s166
      %s168 = sphi 0, %s166
      %s169 = sphi 0, %s168
      %s183 = sphi 0, %s169
      %s187 = sphi 0, %s187
      %s189 = sphi 0, %s187
      %s190 = sphi 0, %s189
      %s204 = sphi 0, %s190
      %s208 = sphi 0, %s208
      %s210 = sphi 0, %s208
      %s211 = sphi 0, %s210
      %s225 = sphi 0, %s211
      %s229 = sphi 0, %s229
      %s231 = sphi 0, %s229
      %s232 = sphi 0, %s231
      %s246 = sphi 0, %s232
      %s250 = sphi 0, %s250
      %s252 = sphi 0, %s250
      %s253 = sphi 0, %s252
      %s267 = sphi 0, %s253
      %s271 = sphi 0, %s271
      %s273 = sphi 0, %s271
      %s274 = sphi 0, %s273
      %s288 = sphi 0, %s274
      %s292 = sphi 0, %s292
      %s294 = sphi 0, %s292
      %s295 = sphi 0, %s294
      %s309 = sphi 0, %s295
      %s315 = sphi 0, %s317
      %s318 = sphi 0, %s315
      %s319 = sphi 0, %s318
      %s335 = sphi 0, %s319
    $region4: #{tpu_custom_call.1} parent=1 // loop_header_branch
      %30 = sbr.rel (%p28) target = $region8
    $region5: #{tpu_custom_call.1} parent=1 // loop_body
      %s32 = ssub.s32 %s27, 1
      %s33 = ssub.s32 %s27, 2
      %s34 = sadd.s32 %s27, 1
      %s35 = ssub.s32 %s27, %s34
      %p36 = scmp.eq.s32.totalorder %s35, 0
      %s38 = sadd.s32 %s37, 1
      %s39 = scalar_select %p36, %s37, %s38
      %p42 = pneg %p36
      %p43 = scmp.eq.s32.totalorder %s27, 1
      %p44 = por %p42, %p43
      %p45 = scmp.ne.s32.totalorder %s37, %s40
      %p46 = scmp.eq.s32.totalorder %s27, 0
      %p47 = por %p45, %p46
      %p48 = scmp.ne.s32.totalorder %s37, %s40
      %p49 = scmp.eq.s32.totalorder %s32, 1
      %p50 = por %p48, %p49
      %p51 = scmp.ne.s32.totalorder %s40, %s41
      %p52 = scmp.eq.s32.totalorder %s32, 0
      %p53 = por %p51, %p52
      %p54 = scmp.ne.s32.totalorder %s40, %s41
      %p55 = scmp.eq.s32.totalorder %s33, 1
      %p56 = por %p54, %p55
      %p58 = scmp.ne.s32.totalorder %s41, %s57
      %p59 = scmp.eq.s32.totalorder %s33, 0
      %p60 = por %p58, %p59
      %s62 = sadd.s32 %s61, 1
      %p65 = scmp.eq.s32.totalorder %s27, 1
      %p66 = scmp.ne.s32.totalorder %s61, %s63
      %p67 = scmp.eq.s32.totalorder %s27, 0
      %p68 = por %p66, %p67
      %p69 = scmp.ne.s32.totalorder %s61, %s63
      %p70 = scmp.eq.s32.totalorder %s32, 1
      %p71 = por %p69, %p70
      %p72 = scmp.ne.s32.totalorder %s63, %s64
      %p73 = scmp.eq.s32.totalorder %s32, 0
      %p74 = por %p72, %p73
      %p75 = scmp.ne.s32.totalorder %s63, %s64
      %p76 = scmp.eq.s32.totalorder %s33, 1
      %p77 = por %p75, %p76
      %p79 = scmp.ne.s32.totalorder %s64, %s78
      %p80 = scmp.eq.s32.totalorder %s33, 0
      %p81 = por %p79, %p80
      %s83 = sadd.s32 %s82, 1
      %p86 = scmp.eq.s32.totalorder %s27, 1
      %p87 = scmp.ne.s32.totalorder %s82, %s84
      %p88 = scmp.eq.s32.totalorder %s27, 0
      %p89 = por %p87, %p88
      %p90 = scmp.ne.s32.totalorder %s82, %s84
      %p91 = scmp.eq.s32.totalorder %s32, 1
      %p92 = por %p90, %p91
      %p93 = scmp.ne.s32.totalorder %s84, %s85
      %p94 = scmp.eq.s32.totalorder %s32, 0
      %p95 = por %p93, %p94
      %p96 = scmp.ne.s32.totalorder %s84, %s85
      %p97 = scmp.eq.s32.totalorder %s33, 1
      %p98 = por %p96, %p97
      %p100 = scmp.ne.s32.totalorder %s85, %s99
      %p101 = scmp.eq.s32.totalorder %s33, 0
      %p102 = por %p100, %p101
      %s104 = sadd.s32 %s103, 1
      %p107 = scmp.eq.s32.totalorder %s27, 1
      %p108 = scmp.ne.s32.totalorder %s103, %s105
      %p109 = scmp.eq.s32.totalorder %s27, 0
      %p110 = por %p108, %p109
      %p111 = scmp.ne.s32.totalorder %s103, %s105
      %p112 = scmp.eq.s32.totalorder %s32, 1
      %p113 = por %p111, %p112
      %p114 = scmp.ne.s32.totalorder %s105, %s106
      %p115 = scmp.eq.s32.totalorder %s32, 0
      %p116 = por %p114, %p115
      %p117 = scmp.ne.s32.totalorder %s105, %s106
      %p118 = scmp.eq.s32.totalorder %s33, 1
      %p119 = por %p117, %p118
      %p121 = scmp.ne.s32.totalorder %s106, %s120
      %p122 = scmp.eq.s32.totalorder %s33, 0
      %p123 = por %p121, %p122
      %s125 = sadd.s32 %s124, 1
      %p128 = scmp.eq.s32.totalorder %s27, 1
      %p129 = scmp.ne.s32.totalorder %s124, %s126
      %p130 = scmp.eq.s32.totalorder %s27, 0
      %p131 = por %p129, %p130
      %p132 = scmp.ne.s32.totalorder %s124, %s126
      %p133 = scmp.eq.s32.totalorder %s32, 1
      %p134 = por %p132, %p133
      %p135 = scmp.ne.s32.totalorder %s126, %s127
      %p136 = scmp.eq.s32.totalorder %s32, 0
      %p137 = por %p135, %p136
      %p138 = scmp.ne.s32.totalorder %s126, %s127
      %p139 = scmp.eq.s32.totalorder %s33, 1
      %p140 = por %p138, %p139
      %p142 = scmp.ne.s32.totalorder %s127, %s141
      %p143 = scmp.eq.s32.totalorder %s33, 0
      %p144 = por %p142, %p143
      %s146 = sadd.s32 %s145, 1
      %p149 = scmp.eq.s32.totalorder %s27, 1
      %p150 = scmp.ne.s32.totalorder %s145, %s147
      %p151 = scmp.eq.s32.totalorder %s27, 0
      %p152 = por %p150, %p151
      %p153 = scmp.ne.s32.totalorder %s145, %s147
      %p154 = scmp.eq.s32.totalorder %s32, 1
      %p155 = por %p153, %p154
      %p156 = scmp.ne.s32.totalorder %s147, %s148
      %p157 = scmp.eq.s32.totalorder %s32, 0
      %p158 = por %p156, %p157
      %p159 = scmp.ne.s32.totalorder %s147, %s148
      %p160 = scmp.eq.s32.totalorder %s33, 1
      %p161 = por %p159, %p160
      %p163 = scmp.ne.s32.totalorder %s148, %s162
      %p164 = scmp.eq.s32.totalorder %s33, 0
      %p165 = por %p163, %p164
      %s167 = sadd.s32 %s166, 1
      %p170 = scmp.eq.s32.totalorder %s27, 1
      %p171 = scmp.ne.s32.totalorder %s166, %s168
      %p172 = scmp.eq.s32.totalorder %s27, 0
      %p173 = por %p171, %p172
      %p174 = scmp.ne.s32.totalorder %s166, %s168
      %p175 = scmp.eq.s32.totalorder %s32, 1
      %p176 = por %p174, %p175
      %p177 = scmp.ne.s32.totalorder %s168, %s169
      %p178 = scmp.eq.s32.totalorder %s32, 0
      %p179 = por %p177, %p178
      %p180 = scmp.ne.s32.totalorder %s168, %s169
      %p181 = scmp.eq.s32.totalorder %s33, 1
      %p182 = por %p180, %p181
      %p184 = scmp.ne.s32.totalorder %s169, %s183
      %p185 = scmp.eq.s32.totalorder %s33, 0
      %p186 = por %p184, %p185
      %s188 = sadd.s32 %s187, 1
      %p191 = scmp.eq.s32.totalorder %s27, 1
      %p192 = scmp.ne.s32.totalorder %s187, %s189
      %p193 = scmp.eq.s32.totalorder %s27, 0
      %p194 = por %p192, %p193
      %p195 = scmp.ne.s32.totalorder %s187, %s189
      %p196 = scmp.eq.s32.totalorder %s32, 1
      %p197 = por %p195, %p196
      %p198 = scmp.ne.s32.totalorder %s189, %s190
      %p199 = scmp.eq.s32.totalorder %s32, 0
      %p200 = por %p198, %p199
      %p201 = scmp.ne.s32.totalorder %s189, %s190
      %p202 = scmp.eq.s32.totalorder %s33, 1
      %p203 = por %p201, %p202
      %p205 = scmp.ne.s32.totalorder %s190, %s204
      %p206 = scmp.eq.s32.totalorder %s33, 0
      %p207 = por %p205, %p206
      %s209 = sadd.s32 %s208, 1
      %p212 = scmp.eq.s32.totalorder %s27, 1
      %p213 = scmp.ne.s32.totalorder %s208, %s210
      %p214 = scmp.eq.s32.totalorder %s27, 0
      %p215 = por %p213, %p214
      %p216 = scmp.ne.s32.totalorder %s208, %s210
      %p217 = scmp.eq.s32.totalorder %s32, 1
      %p218 = por %p216, %p217
      %p219 = scmp.ne.s32.totalorder %s210, %s211
      %p220 = scmp.eq.s32.totalorder %s32, 0
      %p221 = por %p219, %p220
      %p222 = scmp.ne.s32.totalorder %s210, %s211
      %p223 = scmp.eq.s32.totalorder %s33, 1
      %p224 = por %p222, %p223
      %p226 = scmp.ne.s32.totalorder %s211, %s225
      %p227 = scmp.eq.s32.totalorder %s33, 0
      %p228 = por %p226, %p227
      %s230 = sadd.s32 %s229, 1
      %p233 = scmp.eq.s32.totalorder %s27, 1
      %p234 = scmp.ne.s32.totalorder %s229, %s231
      %p235 = scmp.eq.s32.totalorder %s27, 0
      %p236 = por %p234, %p235
      %p237 = scmp.ne.s32.totalorder %s229, %s231
      %p238 = scmp.eq.s32.totalorder %s32, 1
      %p239 = por %p237, %p238
      %p240 = scmp.ne.s32.totalorder %s231, %s232
      %p241 = scmp.eq.s32.totalorder %s32, 0
      %p242 = por %p240, %p241
      %p243 = scmp.ne.s32.totalorder %s231, %s232
      %p244 = scmp.eq.s32.totalorder %s33, 1
      %p245 = por %p243, %p244
      %p247 = scmp.ne.s32.totalorder %s232, %s246
      %p248 = scmp.eq.s32.totalorder %s33, 0
      %p249 = por %p247, %p248
      %s251 = sadd.s32 %s250, 1
      %p254 = scmp.eq.s32.totalorder %s27, 1
      %p255 = scmp.ne.s32.totalorder %s250, %s252
      %p256 = scmp.eq.s32.totalorder %s27, 0
      %p257 = por %p255, %p256
      %p258 = scmp.ne.s32.totalorder %s250, %s252
      %p259 = scmp.eq.s32.totalorder %s32, 1
      %p260 = por %p258, %p259
      %p261 = scmp.ne.s32.totalorder %s252, %s253
      %p262 = scmp.eq.s32.totalorder %s32, 0
      %p263 = por %p261, %p262
      %p264 = scmp.ne.s32.totalorder %s252, %s253
      %p265 = scmp.eq.s32.totalorder %s33, 1
      %p266 = por %p264, %p265
      %p268 = scmp.ne.s32.totalorder %s253, %s267
      %p269 = scmp.eq.s32.totalorder %s33, 0
      %p270 = por %p268, %p269
      %s272 = sadd.s32 %s271, 1
      %p275 = scmp.eq.s32.totalorder %s27, 1
      %p276 = scmp.ne.s32.totalorder %s271, %s273
      %p277 = scmp.eq.s32.totalorder %s27, 0
      %p278 = por %p276, %p277
      %p279 = scmp.ne.s32.totalorder %s271, %s273
      %p280 = scmp.eq.s32.totalorder %s32, 1
      %p281 = por %p279, %p280
      %p282 = scmp.ne.s32.totalorder %s273, %s274
      %p283 = scmp.eq.s32.totalorder %s32, 0
      %p284 = por %p282, %p283
      %p285 = scmp.ne.s32.totalorder %s273, %s274
      %p286 = scmp.eq.s32.totalorder %s33, 1
      %p287 = por %p285, %p286
      %p289 = scmp.ne.s32.totalorder %s274, %s288
      %p290 = scmp.eq.s32.totalorder %s33, 0
      %p291 = por %p289, %p290
      %s293 = sadd.s32 %s292, 1
      %p296 = scmp.eq.s32.totalorder %s27, 1
      %p297 = scmp.ne.s32.totalorder %s292, %s294
      %p298 = scmp.eq.s32.totalorder %s27, 0
      %p299 = por %p297, %p298
      %p300 = scmp.ne.s32.totalorder %s292, %s294
      %p301 = scmp.eq.s32.totalorder %s32, 1
      %p302 = por %p300, %p301
      %p303 = scmp.ne.s32.totalorder %s294, %s295
      %p304 = scmp.eq.s32.totalorder %s32, 0
      %p305 = por %p303, %p304
      %p306 = scmp.ne.s32.totalorder %s294, %s295
      %p307 = scmp.eq.s32.totalorder %s33, 1
      %p308 = por %p306, %p307
      %p310 = scmp.ne.s32.totalorder %s295, %s309
      %p311 = scmp.eq.s32.totalorder %s33, 0
      %p312 = por %p310, %p311
      %s313 = ssub.s32 %s27, %s34
      %p314 = scmp.eq.s32.totalorder %s313, 0
      %s316 = sadd.s32 %s315, 1
      %s317 = scalar_select %p314, %s315, %s316
      %p320 = pneg %p314
      %p321 = scmp.eq.s32.totalorder %s27, 1
      %p322 = por %p320, %p321
      %p323 = scmp.ne.s32.totalorder %s315, %s318
      %p324 = scmp.eq.s32.totalorder %s27, 0
      %p325 = por %p323, %p324
      %p326 = scmp.ne.s32.totalorder %s315, %s318
      %p327 = scmp.eq.s32.totalorder %s32, 1
      %p328 = por %p326, %p327
      %p329 = scmp.ne.s32.totalorder %s318, %s319
      %p330 = scmp.eq.s32.totalorder %s32, 0
      %p331 = por %p329, %p330
      %p332 = scmp.ne.s32.totalorder %s318, %s319
      %p333 = scmp.eq.s32.totalorder %s33, 1
      %p334 = por %p332, %p333
      %p336 = scmp.ne.s32.totalorder %s319, %s335
      %p337 = scmp.eq.s32.totalorder %s33, 0
      %p338 = por %p336, %p337
      %p339 = scmp.le.s32.totalorder 1, %s27
      %p340 = scmp.lt.s32.totalorder %s27, 3
      %p341 = pnand %p339, %p340
      %p342 = pneg %p341
      // Predicated region
      $region9: #{tpu_custom_call.1} parent=5 // pred_check
        _
      $region10: #{tpu_custom_call.1} parent=5 // pred_check_branch
        %344 = sbr.rel (%p341) target = $region12
      $region11: #{tpu_custom_call.1} parent=5 // pred_region
        %s345 = ssub.s32 %s27, 1
        // Predicated region
        $region13: #{tpu_custom_call.1} parent=11 // pred_check
          %p346 = pneg %p74
        $region14: #{tpu_custom_call.1} parent=11 // pred_check_branch
          %348 = sbr.rel (%p346) target = $region16
        $region15: #{tpu_custom_call.1} parent=11 // pred_region
          %s350 = ssub.s32 3072, 3072
          %351 = vsyncadd [#allocation7], %s350
          %s352 = sshll.u32 [#allocation6], 4
          %s353 = int_to_ptr.vmem [resolvable:$true] %s352
          %358 = dma.hbm_to_vmem [thread:$0]  %s1, 3072, %s353, [#allocation7], 192, 192, 12
        $region16: #{tpu_custom_call.1} parent=11 // pred_fallthru
          _
        // Predicated region
        $region17: #{tpu_custom_call.1} parent=11 // pred_check
          %p359 = pneg %p95
        $region18: #{tpu_custom_call.1} parent=11 // pred_check_branch
          %361 = sbr.rel (%p359) target = $region20
        $region19: #{tpu_custom_call.1} parent=11 // pred_region
          _
        $region20: #{tpu_custom_call.1} parent=11 // pred_fallthru
          _
        // Predicated region
        $region21: #{tpu_custom_call.1} parent=11 // pred_check
          %p362 = pneg %p116
        $region22: #{tpu_custom_call.1} parent=11 // pred_check_branch
          %364 = sbr.rel (%p362) target = $region24
        $region23: #{tpu_custom_call.1} parent=11 // pred_region
          %s366 = ssub.s32 1024, 1024
          %367 = vsyncadd [#allocation7], %s366
          %s368 = sshll.u32 [#allocation8], 4
          %s369 = int_to_ptr.vmem [resolvable:$true] %s368
          %374 = dma.hbm_to_vmem [thread:$0]  %s3, 1024, %s369, [#allocation7], 64, 64, 4
        $region24: #{tpu_custom_call.1} parent=11 // pred_fallthru
          _
        // Predicated region
        $region25: #{tpu_custom_call.1} parent=11 // pred_check
          %p375 = pneg %p137
        $region26: #{tpu_custom_call.1} parent=11 // pred_check_branch
          %377 = sbr.rel (%p375) target = $region28
        $region27: #{tpu_custom_call.1} parent=11 // pred_region
          _
        $region28: #{tpu_custom_call.1} parent=11 // pred_fallthru
          _
        // Predicated region
        $region29: #{tpu_custom_call.1} parent=11 // pred_check
          %p378 = pneg %p158
        $region30: #{tpu_custom_call.1} parent=11 // pred_check_branch
          %380 = sbr.rel (%p378) target = $region32
        $region31: #{tpu_custom_call.1} parent=11 // pred_region
          _
        $region32: #{tpu_custom_call.1} parent=11 // pred_fallthru
          _
        // Predicated region
        $region33: #{tpu_custom_call.1} parent=11 // pred_check
          %p381 = pneg %p179
        $region34: #{tpu_custom_call.1} parent=11 // pred_check_branch
          %383 = sbr.rel (%p381) target = $region36
        $region35: #{tpu_custom_call.1} parent=11 // pred_region
          _
        $region36: #{tpu_custom_call.1} parent=11 // pred_fallthru
          _
        // Predicated region
        $region37: #{tpu_custom_call.1} parent=11 // pred_check
          %p384 = pneg %p200
        $region38: #{tpu_custom_call.1} parent=11 // pred_check_branch
          %386 = sbr.rel (%p384) target = $region40
        $region39: #{tpu_custom_call.1} parent=11 // pred_region
          %s388 = ssub.s32 2048, 2048
          %389 = vsyncadd [#allocation10], %s388
          %s390 = sshll.u32 [#allocation9], 4
          %s391 = int_to_ptr.vmem [resolvable:$true] %s390
          %396 = dma.hbm_to_vmem [thread:$0]  %s7, 2048, %s391, [#allocation10], 128, 128, 8
        $region40: #{tpu_custom_call.1} parent=11 // pred_fallthru
          _
        // Predicated region
        $region41: #{tpu_custom_call.1} parent=11 // pred_check
          %p397 = pneg %p221
        $region42: #{tpu_custom_call.1} parent=11 // pred_check_branch
          %399 = sbr.rel (%p397) target = $region44
        $region43: #{tpu_custom_call.1} parent=11 // pred_region
          _
        $region44: #{tpu_custom_call.1} parent=11 // pred_fallthru
          _
        // Predicated region
        $region45: #{tpu_custom_call.1} parent=11 // pred_check
          %p400 = pneg %p242
        $region46: #{tpu_custom_call.1} parent=11 // pred_check_branch
          %402 = sbr.rel (%p400) target = $region48
        $region47: #{tpu_custom_call.1} parent=11 // pred_region
          %s404 = ssub.s32 2048, 2048
          %405 = vsyncadd [#allocation10], %s404
          %s406 = sshll.u32 [#allocation11], 4
          %s407 = int_to_ptr.vmem [resolvable:$true] %s406
          %412 = dma.hbm_to_vmem [thread:$0]  %s9, 2048, %s407, [#allocation10], 64, 64, 4
        $region48: #{tpu_custom_call.1} parent=11 // pred_fallthru
          _
        // Predicated region
        $region49: #{tpu_custom_call.1} parent=11 // pred_check
          %p413 = pneg %p263
        $region50: #{tpu_custom_call.1} parent=11 // pred_check_branch
          %415 = sbr.rel (%p413) target = $region52
        $region51: #{tpu_custom_call.1} parent=11 // pred_region
          _
        $region52: #{tpu_custom_call.1} parent=11 // pred_fallthru
          _
        // Predicated region
        $region53: #{tpu_custom_call.1} parent=11 // pred_check
          %p416 = pneg %p284
        $region54: #{tpu_custom_call.1} parent=11 // pred_check_branch
          %418 = sbr.rel (%p416) target = $region56
        $region55: #{tpu_custom_call.1} parent=11 // pred_region
          _
        $region56: #{tpu_custom_call.1} parent=11 // pred_fallthru
          _
        // Predicated region
        $region57: #{tpu_custom_call.1} parent=11 // pred_check
          %p419 = pneg %p305
        $region58: #{tpu_custom_call.1} parent=11 // pred_check_branch
          %421 = sbr.rel (%p419) target = $region60
        $region59: #{tpu_custom_call.1} parent=11 // pred_region
          _
        $region60: #{tpu_custom_call.1} parent=11 // pred_fallthru
          _
      $region12: #{tpu_custom_call.1} parent=5 // pred_fallthru
        _
      %p422 = scmp.lt.s32.totalorder %s27, 2
      // Predicated region
      $region61: #{tpu_custom_call.1} parent=5 // pred_check
        %p423 = pneg %p422
      $region62: #{tpu_custom_call.1} parent=5 // pred_check_branch
        %425 = sbr.rel (%p423) target = $region64
      $region63: #{tpu_custom_call.1} parent=5 // pred_region
        // Predicated region
        $region65: #{tpu_custom_call.1} parent=63 // pred_check
          %p426 = pneg %p47
        $region66: #{tpu_custom_call.1} parent=63 // pred_check_branch
          %428 = sbr.rel (%p426) target = $region68
        $region67: #{tpu_custom_call.1} parent=63 // pred_region
          %s429 = sand.u32 %s37, 1
          %s430 = scalar_lea.sflag [#allocation4], %s429
          %s431 = sand.u32 %s37, 1
          %s432 = smul.addr %s431, 16
          %s433 = scalar_lea.vmem [#allocation3], %s432
          %s435 = ssub.s32 256, 256
          %436 = vsyncadd %s430, %s435
          %s437 = smul.addr %s27, 2
          %s438 = smul.addr %s437, 128
          %s439 = scalar_lea.hbm %s0, %s438
          %s440 = sshll.u32 %s433, 4
          %s441 = int_to_ptr.vmem [resolvable:$true] %s440
          %446 = dma.hbm_to_vmem [thread:$0]  %s439, 256, %s441, %s430, 128, 128, 8
        $region68: #{tpu_custom_call.1} parent=63 // pred_fallthru
          _
      $region64: #{tpu_custom_call.1} parent=5 // pred_fallthru
        _
      %p447 = scmp.le.s32.totalorder 1, %s27
      %p448 = scmp.lt.s32.totalorder %s27, 3
      %p449 = pnand %p447, %p448
      %p450 = pneg %p449
      // Predicated region
      $region69: #{tpu_custom_call.1} parent=5 // pred_check
        _
      $region70: #{tpu_custom_call.1} parent=5 // pred_check_branch
        %452 = sbr.rel (%p449) target = $region72
      $region71: #{tpu_custom_call.1} parent=5 // pred_region
        %s453 = ssub.s32 %s27, 1
        %s454 = sand.u32 %s40, 1
        %s455 = scalar_lea.sflag [#allocation4], %s454
        %s456 = sand.u32 %s40, 1
        %s457 = smul.addr %s456, 16
        %s458 = scalar_lea.vmem [#allocation3], %s457
        // Predicated region
        $region73: #{tpu_custom_call.1} parent=71 // pred_check
          %p459 = pneg %p53
        $region74: #{tpu_custom_call.1} parent=71 // pred_check_branch
          %461 = sbr.rel (%p459) target = $region76
        $region75: #{tpu_custom_call.1} parent=71 // pred_region
          %462 = dma.done %s455, 256
        $region76: #{tpu_custom_call.1} parent=71 // pred_fallthru
          _
        // Predicated region
        $region77: #{tpu_custom_call.1} parent=71 // pred_check
          %p463 = pneg %p74
        $region78: #{tpu_custom_call.1} parent=71 // pred_check_branch
          %465 = sbr.rel (%p463) target = $region80
        $region79: #{tpu_custom_call.1} parent=71 // pred_region
          %466 = dma.done [#allocation7], 3072
        $region80: #{tpu_custom_call.1} parent=71 // pred_fallthru
          _
        // Predicated region
        $region81: #{tpu_custom_call.1} parent=71 // pred_check
          %p467 = pneg %p116
        $region82: #{tpu_custom_call.1} parent=71 // pred_check_branch
          %469 = sbr.rel (%p467) target = $region84
        $region83: #{tpu_custom_call.1} parent=71 // pred_region
          %470 = dma.done [#allocation7], 1024
        $region84: #{tpu_custom_call.1} parent=71 // pred_fallthru
          _
        // Predicated region
        $region85: #{tpu_custom_call.1} parent=71 // pred_check
          %p471 = pneg %p200
        $region86: #{tpu_custom_call.1} parent=71 // pred_check_branch
          %473 = sbr.rel (%p471) target = $region88
        $region87: #{tpu_custom_call.1} parent=71 // pred_region
          %474 = dma.done [#allocation10], 2048
        $region88: #{tpu_custom_call.1} parent=71 // pred_fallthru
          _
        // Predicated region
        $region89: #{tpu_custom_call.1} parent=71 // pred_check
          %p475 = pneg %p242
        $region90: #{tpu_custom_call.1} parent=71 // pred_check_branch
          %477 = sbr.rel (%p475) target = $region92
        $region91: #{tpu_custom_call.1} parent=71 // pred_region
          %478 = dma.done [#allocation10], 2048
        $region92: #{tpu_custom_call.1} parent=71 // pred_fallthru
          _
        %s479 = sand.u32 %s40, 1
        %s480 = scalar_lea.sflag [#allocation4], %s479
        %s481 = sand.u32 %s40, 1
        %s482 = smul.addr %s481, 16
        %s483 = scalar_lea.vmem [#allocation3], %s482
        %p484 = pneg %p53
        %p485 = pneg %p50
        %p486 = pneg %p74
        %p487 = pneg %p71
        %p488 = pneg %p95
        %p489 = pneg %p92
        %p490 = pneg %p116
        %p491 = pneg %p113
        %p492 = pneg %p137
        %p493 = pneg %p134
        %p494 = pneg %p158
        %p495 = pneg %p155
        %p496 = pneg %p179
        %p497 = pneg %p176
        %p498 = pneg %p200
        %p499 = pneg %p197
        %p500 = pneg %p221
        %p501 = pneg %p218
        %p502 = pneg %p242
        %p503 = pneg %p239
        %p504 = pneg %p263
        %p505 = pneg %p260
        %p506 = pneg %p284
        %p507 = pneg %p281
        %p508 = pneg %p305
        %p509 = pneg %p302
        %p510 = pneg %p331
        %p511 = pneg %p328
        %s512 = sand.u32 %s318, 1
        %s513 = scalar_lea.sflag [#allocation5], %s512
        %s514 = sand.u32 %s318, 1
        %s515 = smul.addr %s514, 16
        %s516 = scalar_lea.vmem [#allocation12], %s515
        %v518 = vld [vmem:[%s458] sm:$0xff]
        %v519 = vld [vmem:[%s458 + $0x8] sm:$0xff]
        %v520 = vpack.c.bf16 %v519, %v518
        %v521 = vld [vmem:[#allocation6] sm:$0xff]
        %v522 = vld [vmem:[#allocation6 + $0x8] sm:$0xf]
        %v523 = vld [vmem:[#allocation6 + $0xc] sm:$0xff]
        %v524 = vld [vmem:[#allocation6 + $0x14] sm:$0xf]
        %v525 = vld [vmem:[#allocation6 + $0x18] sm:$0xff]
        %v526 = vld [vmem:[#allocation6 + $0x20] sm:$0xf]
        %v527 = vld [vmem:[#allocation6 + $0x24] sm:$0xff]
        %v528 = vld [vmem:[#allocation6 + $0x2c] sm:$0xf]
        %v529 = vld [vmem:[#allocation6 + $0x30] sm:$0xff]
        %v530 = vld [vmem:[#allocation6 + $0x38] sm:$0xf]
        %v531 = vld [vmem:[#allocation6 + $0x3c] sm:$0xff]
        %v532 = vld [vmem:[#allocation6 + $0x44] sm:$0xf]
        %v533 = vld [vmem:[#allocation6 + $0x48] sm:$0xff]
        %v534 = vld [vmem:[#allocation6 + $0x50] sm:$0xf]
        %v535 = vld [vmem:[#allocation6 + $0x54] sm:$0xff]
        %v536 = vld [vmem:[#allocation6 + $0x5c] sm:$0xf]
        %v537 = vld [vmem:[#allocation6 + $0x60] sm:$0xff]
        %v538 = vld [vmem:[#allocation6 + $0x68] sm:$0xf]
        %v539 = vld [vmem:[#allocation6 + $0x6c] sm:$0xff]
        %v540 = vld [vmem:[#allocation6 + $0x74] sm:$0xf]
        %v541 = vld [vmem:[#allocation6 + $0x78] sm:$0xff]
        %v542 = vld [vmem:[#allocation6 + $0x80] sm:$0xf]
        %v543 = vld [vmem:[#allocation6 + $0x84] sm:$0xff]
        %v544 = vld [vmem:[#allocation6 + $0x8c] sm:$0xf]
        %v545 = vld [vmem:[#allocation6 + $0x90] sm:$0xff]
        %v546 = vld [vmem:[#allocation6 + $0x98] sm:$0xf]
        %v547 = vld [vmem:[#allocation6 + $0x9c] sm:$0xff]
        %v548 = vld [vmem:[#allocation6 + $0xa4] sm:$0xf]
        %v549 = vld [vmem:[#allocation6 + $0xa8] sm:$0xff]
        %v550 = vld [vmem:[#allocation6 + $0xb0] sm:$0xf]
        %v551 = vld [vmem:[#allocation6 + $0xb4] sm:$0xff]
        %v552 = vld [vmem:[#allocation6 + $0xbc] sm:$0xf]
        %v553 = vld [vmem:[%s2] sm:$0x7]
        %v555 = vlaneseq
        %v556 = vshrl.u32 %v555, 7
        %v557 = vsub.s32 0, %v556
        %v558 = vrot.slane %v553, %v557
        %v559 = vlaneseq
        %v560 = vshrl.u32 %v559, 7
        %v561 = vsub.s32 1, %v560
        %v562 = vrot.slane %v553, %v561
        %v563 = vlaneseq
        %v564 = vshrl.u32 %v563, 7
        %v565 = vsub.s32 2, %v564
        %v566 = vrot.slane %v553, %v565
        %v602 = vunpack.c.l.b16 %v521
        %v603 = vunpack.c.h.b16 %v521
        %v604 = vunpack.c.l.b16 %v522
        %v605 = vunpack.c.l.b16 %v523
        %v606 = vunpack.c.h.b16 %v523
        %v607 = vunpack.c.l.b16 %v524
        %v608 = vunpack.c.l.b16 %v525
        %v609 = vunpack.c.h.b16 %v525
        %v610 = vunpack.c.l.b16 %v526
        %v611 = vunpack.c.l.b16 %v527
        %v612 = vunpack.c.h.b16 %v527
        %v613 = vunpack.c.l.b16 %v528
        %v614 = vunpack.c.l.b16 %v529
        %v615 = vunpack.c.h.b16 %v529
        %v616 = vunpack.c.l.b16 %v530
        %v617 = vunpack.c.l.b16 %v531
        %v618 = vunpack.c.h.b16 %v531
        %v619 = vunpack.c.l.b16 %v532
        %v620 = vunpack.c.l.b16 %v533
        %v621 = vunpack.c.h.b16 %v533
        %v622 = vunpack.c.l.b16 %v534
        %v623 = vunpack.c.l.b16 %v535
        %v624 = vunpack.c.h.b16 %v535
        %v625 = vunpack.c.l.b16 %v536
        %v626 = vunpack.c.l.b16 %v537
        %v627 = vunpack.c.h.b16 %v537
        %v628 = vunpack.c.l.b16 %v538
        %v629 = vunpack.c.l.b16 %v539
        %v630 = vunpack.c.h.b16 %v539
        %v631 = vunpack.c.l.b16 %v540
        %v632 = vunpack.c.l.b16 %v541
        %v633 = vunpack.c.h.b16 %v541
        %v634 = vunpack.c.l.b16 %v542
        %v635 = vunpack.c.l.b16 %v543
        %v636 = vunpack.c.h.b16 %v543
        %v637 = vunpack.c.l.b16 %v544
        %v638 = vunpack.c.l.b16 %v545
        %v639 = vunpack.c.h.b16 %v545
        %v640 = vunpack.c.l.b16 %v546
        %v641 = vunpack.c.l.b16 %v547
        %v642 = vunpack.c.h.b16 %v547
        %v643 = vunpack.c.l.b16 %v548
        %v644 = vunpack.c.l.b16 %v549
        %v645 = vunpack.c.h.b16 %v549
        %v646 = vunpack.c.l.b16 %v550
        %v647 = vunpack.c.l.b16 %v551
        %v648 = vunpack.c.h.b16 %v551
        %v649 = vunpack.c.l.b16 %v552
        %v650 = vpack.c.b16 %v605, %v602
        %v651 = vpack.c.b16 %v606, %v603
        %v652 = vpack.c.b16 %v607, %v604
        %v653 = vpack.c.b16 %v611, %v608
        %v654 = vpack.c.b16 %v612, %v609
        %v655 = vpack.c.b16 %v613, %v610
        %v656 = vpack.c.b16 %v617, %v614
        %v657 = vpack.c.b16 %v618, %v615
        %v658 = vpack.c.b16 %v619, %v616
        %v659 = vpack.c.b16 %v623, %v620
        %v660 = vpack.c.b16 %v624, %v621
        %v661 = vpack.c.b16 %v625, %v622
        %v662 = vpack.c.b16 %v629, %v626
        %v663 = vpack.c.b16 %v630, %v627
        %v664 = vpack.c.b16 %v631, %v628
        %v665 = vpack.c.b16 %v635, %v632
        %v666 = vpack.c.b16 %v636, %v633
        %v667 = vpack.c.b16 %v637, %v634
        %v668 = vpack.c.b16 %v641, %v638
        %v669 = vpack.c.b16 %v642, %v639
        %v670 = vpack.c.b16 %v643, %v640
        %v671 = vpack.c.b16 %v647, %v644
        %v672 = vpack.c.b16 %v648, %v645
        %v673 = vpack.c.b16 %v649, %v646
        %698 = vmatprep.subr.bf16.mxu0 %v651
        %699 = vmatpush1.bf16.msra.mxu0 %v650
        %700 = vmatprep.subr.bf16.mxu0 %v654
        %701 = vmatpush1.bf16.msra.mxu0 %v653
        %702 = vmatprep.subr.bf16.mxu0 %v657
        %703 = vmatpush1.bf16.msra.mxu0 %v656
        %704 = vmatprep.subr.bf16.mxu0 %v660
        %705 = vmatpush1.bf16.msra.mxu0 %v659
        %706 = vmatprep.subr.bf16.mxu0 %v663
        %707 = vmatpush1.bf16.msra.mxu0 %v662
        %708 = vmatprep.subr.bf16.mxu0 %v666
        %709 = vmatpush1.bf16.msra.mxu0 %v665
        %710 = vmatprep.subr.bf16.mxu0 %v669
        %711 = vmatpush1.bf16.msra.mxu0 %v668
        %712 = vmatprep.subr.bf16.mxu0 %v672
        %713 = vmatpush1.bf16.msra.mxu0 %v671
        %714 = vmatprep.subr.bf16.mxu0 0
        %715 = vmatpush1.bf16.msra.mxu0 0
        %716 = vmatprep.subr.bf16.mxu0 0
        %717 = vmatpush1.bf16.msra.mxu0 0
        %718 = vmatprep.subr.bf16.mxu0 0
        %719 = vmatpush1.bf16.msra.mxu0 0
        %720 = vmatprep.subr.bf16.mxu0 0
        %721 = vmatpush1.bf16.msra.mxu0 0
        %722 = vmatprep.subr.bf16.mxu0 0
        %723 = vmatpush1.bf16.msra.mxu0 0
        %724 = vmatprep.subr.bf16.mxu0 0
        %725 = vmatpush1.bf16.msra.mxu0 0
        %726 = vmatprep.subr.bf16.mxu0 0
        %727 = vmatpush1.bf16.msra.mxu0 0
        %728 = vmatprep.subr.bf16.mxu0 0
        %729 = vmatpush1.bf16.msra.mxu0 0
        %730 = vmatprep.mubr.bf16.mxu0 0
        %731 = vmatmul.mubr.bf16.gmra.mrb[0].mxu0 %v520
        %v732 = vpop.f32.mrb[0].mxu0
        %v733 = vadd.f32 %v558, %v732
        %v734 = vpop.f32.mrb[0].mxu0
        %v735 = vadd.f32 %v562, %v734
        %v736 = vpop.f32.mrb[0].mxu0
        %v737 = vadd.f32 %v558, %v736
        %v738 = vpop.f32.mrb[0].mxu0
        %v739 = vadd.f32 %v562, %v738
        %740 = vdwg.mxu0
        %741 = vmatprep.subr.bf16.mxu0 0
        %742 = vmatpush1.bf16.msra.mxu0 %v652
        %743 = vmatprep.subr.bf16.mxu0 0
        %744 = vmatpush1.bf16.msra.mxu0 %v655
        %745 = vmatprep.subr.bf16.mxu0 0
        %746 = vmatpush1.bf16.msra.mxu0 %v658
        %747 = vmatprep.subr.bf16.mxu0 0
        %748 = vmatpush1.bf16.msra.mxu0 %v661
        %749 = vmatprep.subr.bf16.mxu0 0
        %750 = vmatpush1.bf16.msra.mxu0 %v664
        %751 = vmatprep.subr.bf16.mxu0 0
        %752 = vmatpush1.bf16.msra.mxu0 %v667
        %753 = vmatprep.subr.bf16.mxu0 0
        %754 = vmatpush1.bf16.msra.mxu0 %v670
        %755 = vmatprep.subr.bf16.mxu0 0
        %756 = vmatpush1.bf16.msra.mxu0 %v673
        %757 = vmatprep.subr.bf16.mxu0 0
        %758 = vmatpush1.bf16.msra.mxu0 0
        %759 = vmatprep.subr.bf16.mxu0 0
        %760 = vmatpush1.bf16.msra.mxu0 0
        %761 = vmatprep.subr.bf16.mxu0 0
        %762 = vmatpush1.bf16.msra.mxu0 0
        %763 = vmatprep.subr.bf16.mxu0 0
        %764 = vmatpush1.bf16.msra.mxu0 0
        %765 = vmatprep.subr.bf16.mxu0 0
        %766 = vmatpush1.bf16.msra.mxu0 0
        %767 = vmatprep.subr.bf16.mxu0 0
        %768 = vmatpush1.bf16.msra.mxu0 0
        %769 = vmatprep.subr.bf16.mxu0 0
        %770 = vmatpush1.bf16.msra.mxu0 0
        %771 = vmatprep.subr.bf16.mxu0 0
        %772 = vmatpush1.bf16.msra.mxu0 0
        %773 = vmatprep.mubr.bf16.mxu0 0
        %774 = vmatmul.mubr.bf16.gmra.mrb[0].mxu0 %v520
        %v775 = vpop.f32.mrb[0].mxu0
        %v776 = vadd.f32 %v566, %v775
        %v777 = vpop.f32.mrb[0].mxu0
        %v778 = vpop.f32.mrb[0].mxu0
        %v779 = vadd.f32 %v566, %v778
        %v780 = vpop.f32.mrb[0].mxu0
        %781 = vdwg.mxu0
        %v782 = vpack.c.bf16 %v737, %v733
        %v783 = vpack.c.bf16 %v739, %v735
        %v784 = vpack.c.bf16 %v779, %v776
        %vm785 = vcmask 261120
        %v787 = vsel %vm785, %v782, 0
        %v790 = vsel %vm785, %v783, 0
        %792 = vmatprep.subr.bf16.mxu0 0
        %793 = vmatpush1.bf16.xpose.msra.mxu0 %v790
        %794 = vmatprep.subr.bf16.mxu0 0
        %795 = vmatpush1.bf16.xpose.msra.mxu0 0
        %796 = vmatprep.subr.bf16.mxu0 0
        %797 = vmatpush1.bf16.xpose.msra.mxu0 0
        %798 = vmatprep.subr.bf16.mxu0 0
        %799 = vmatpush1.bf16.xpose.msra.mxu0 0
        %800 = vmatprep.subr.bf16.mxu0 0
        %801 = vmatpush1.bf16.xpose.msra.mxu0 0
        %802 = vmatprep.subr.bf16.mxu0 0
        %803 = vmatpush1.bf16.xpose.msra.mxu0 0
        %804 = vmatprep.subr.bf16.mxu0 0
        %805 = vmatpush1.bf16.xpose.msra.mxu0 0
        %806 = vmatprep.subr.bf16.mxu0 0
        %807 = vmatpush1.bf16.xpose.msra.mxu0 0
        %808 = vmatprep.subr.bf16.mxu0 0
        %809 = vmatpush1.bf16.xpose.msra.mxu0 0
        %810 = vmatprep.subr.bf16.mxu0 0
        %811 = vmatpush1.bf16.xpose.msra.mxu0 0
        %812 = vmatprep.subr.bf16.mxu0 0
        %813 = vmatpush1.bf16.xpose.msra.mxu0 0
        %814 = vmatprep.subr.bf16.mxu0 0
        %815 = vmatpush1.bf16.xpose.msra.mxu0 0
        %816 = vmatprep.subr.bf16.mxu0 0
        %817 = vmatpush1.bf16.xpose.msra.mxu0 0
        %818 = vmatprep.subr.bf16.mxu0 0
        %819 = vmatpush1.bf16.xpose.msra.mxu0 0
        %820 = vmatprep.subr.bf16.mxu0 0
        %821 = vmatpush1.bf16.xpose.msra.mxu0 0
        %822 = vmatprep.subr.bf16.mxu0 0
        %823 = vmatpush1.bf16.xpose.msra.mxu0 0
        %824 = vmatprep.mubr.bf16.mxu0 0
        %825 = vmatmul.mubr.bf16.gmra.mrb[0].mxu0 %v787
        %v826 = vpop.f32.mrb[0].mxu0
        %v827 = vadd.f32 0.0, %v826
        %v828 = vpop.f32.mrb[0].mxu0
        %v829 = vpop.f32.mrb[0].mxu0
        %v830 = vadd.f32 0.0, %v829
        %v831 = vpop.f32.mrb[0].mxu0
        %832 = vdwg.mxu0
        %vm833 = vcmask 130048
        %v834 = vsel %vm833, %v827, -inf
        %835 = vmax.xlane.f32.xlu0 %v834
        %v836 = vpop.xlane.xlu0 %835
        %v837 = vsel %vm833, %v830, -inf
        %838 = vmax.xlane.f32.xlu0 %v837
        %v839 = vpop.xlane.xlu0 %838
        %v840 = vsub.f32 %v827, %v836
        %v841 = vsub.f32 %v830, %v839
        %v842 = vmul.f32 %v840, 1.442695
        %v843 = vpow.pop %v842
        %v844 = vmul.f32 %v841, 1.442695
        %v845 = vpow.pop %v844
        %v846 = vsel %vm833, %v843, 0.0
        %847 = vadd.xlane.f32.xlu0 %v846
        %v848 = vpop.xlane.xlu0 %847
        %v849 = vsel %vm833, %v845, 0.0
        %850 = vadd.xlane.f32.xlu0 %v849
        %v851 = vpop.xlane.xlu0 %850
        %v852 = vpack.c.bf16 %v845, %v843
        %v854 = vsel %vm833, %v852, 0
        %856 = vmatprep.subr.bf16.mxu0 0
        %857 = vmatpush1.bf16.msra.mxu0 %v784
        %858 = vmatprep.subr.bf16.mxu0 0
        %859 = vmatpush1.bf16.msra.mxu0 0
        %860 = vmatprep.subr.bf16.mxu0 0
        %861 = vmatpush1.bf16.msra.mxu0 0
        %862 = vmatprep.subr.bf16.mxu0 0
        %863 = vmatpush1.bf16.msra.mxu0 0
        %864 = vmatprep.subr.bf16.mxu0 0
        %865 = vmatpush1.bf16.msra.mxu0 0
        %866 = vmatprep.subr.bf16.mxu0 0
        %867 = vmatpush1.bf16.msra.mxu0 0
        %868 = vmatprep.subr.bf16.mxu0 0
        %869 = vmatpush1.bf16.msra.mxu0 0
        %870 = vmatprep.subr.bf16.mxu0 0
        %871 = vmatpush1.bf16.msra.mxu0 0
        %872 = vmatprep.subr.bf16.mxu0 0
        %873 = vmatpush1.bf16.msra.mxu0 0
        %874 = vmatprep.subr.bf16.mxu0 0
        %875 = vmatpush1.bf16.msra.mxu0 0
        %876 = vmatprep.subr.bf16.mxu0 0
        %877 = vmatpush1.bf16.msra.mxu0 0
        %878 = vmatprep.subr.bf16.mxu0 0
        %879 = vmatpush1.bf16.msra.mxu0 0
        %880 = vmatprep.subr.bf16.mxu0 0
        %881 = vmatpush1.bf16.msra.mxu0 0
        %882 = vmatprep.subr.bf16.mxu0 0
        %883 = vmatpush1.bf16.msra.mxu0 0
        %884 = vmatprep.subr.bf16.mxu0 0
        %885 = vmatpush1.bf16.msra.mxu0 0
        %886 = vmatprep.subr.bf16.mxu0 0
        %887 = vmatpush1.bf16.msra.mxu0 0
        %888 = vmatprep.mubr.bf16.mxu0 0
        %889 = vmatmul.mubr.bf16.gmra.mrb[0].mxu0 %v854
        %v890 = vpop.f32.mrb[0].mxu0
        %v891 = vadd.f32 0.0, %v890
        %v892 = vpop.f32.mrb[0].mxu0
        %v893 = vpop.f32.mrb[0].mxu0
        %v894 = vadd.f32 0.0, %v893
        %v895 = vpop.f32.mrb[0].mxu0
        %896 = vdwg.mxu0
        %v897 = vrcp.pop %v848
        %v898 = vrcp.pop %v851
        %v899 = vmul.f32 %v891, %v897
        %v900 = vmul.f32 %v894, %v898
        %901 = vst.msk [vmem:[#allocation2] sm:$0xff] %vm785, %v899
        %902 = vst.msk [vmem:[#allocation2 + $0x8] sm:$0xff] %vm785, %v900
        %904 = vrot.lane.b32.xlu0 %v782, 96
        %v905 = vpop.permute.xlu0 %904
        %907 = vrot.lane.b32.xlu0 %v783, 96
        %v908 = vpop.permute.xlu0 %907
        %v910 = vsel %vm785, %v905, 0
        %v913 = vsel %vm785, %v908, 0
        %915 = vmatprep.subr.bf16.mxu0 0
        %916 = vmatpush1.bf16.xpose.msra.mxu0 %v913
        %917 = vmatprep.subr.bf16.mxu0 0
        %918 = vmatpush1.bf16.xpose.msra.mxu0 0
        %919 = vmatprep.subr.bf16.mxu0 0
        %920 = vmatpush1.bf16.xpose.msra.mxu0 0
        %921 = vmatprep.subr.bf16.mxu0 0
        %922 = vmatpush1.bf16.xpose.msra.mxu0 0
        %923 = vmatprep.subr.bf16.mxu0 0
        %924 = vmatpush1.bf16.xpose.msra.mxu0 0
        %925 = vmatprep.subr.bf16.mxu0 0
        %926 = vmatpush1.bf16.xpose.msra.mxu0 0
        %927 = vmatprep.subr.bf16.mxu0 0
        %928 = vmatpush1.bf16.xpose.msra.mxu0 0
        %929 = vmatprep.subr.bf16.mxu0 0
        %930 = vmatpush1.bf16.xpose.msra.mxu0 0
        %931 = vmatprep.subr.bf16.mxu0 0
        %932 = vmatpush1.bf16.xpose.msra.mxu0 0
        %933 = vmatprep.subr.bf16.mxu0 0
        %934 = vmatpush1.bf16.xpose.msra.mxu0 0
        %935 = vmatprep.subr.bf16.mxu0 0
        %936 = vmatpush1.bf16.xpose.msra.mxu0 0
        %937 = vmatprep.subr.bf16.mxu0 0
        %938 = vmatpush1.bf16.xpose.msra.mxu0 0
        %939 = vmatprep.subr.bf16.mxu0 0
        %940 = vmatpush1.bf16.xpose.msra.mxu0 0
        %941 = vmatprep.subr.bf16.mxu0 0
        %942 = vmatpush1.bf16.xpose.msra.mxu0 0
        %943 = vmatprep.subr.bf16.mxu0 0
        %944 = vmatpush1.bf16.xpose.msra.mxu0 0
        %945 = vmatprep.subr.bf16.mxu0 0
        %946 = vmatpush1.bf16.xpose.msra.mxu0 0
        %947 = vmatprep.mubr.bf16.mxu0 0
        %948 = vmatmul.mubr.bf16.gmra.mrb[0].mxu0 %v910
        %v949 = vpop.f32.mrb[0].mxu0
        %v950 = vadd.f32 0.0, %v949
        %v951 = vpop.f32.mrb[0].mxu0
        %v952 = vpop.f32.mrb[0].mxu0
        %v953 = vadd.f32 0.0, %v952
        %v954 = vpop.f32.mrb[0].mxu0
        %955 = vdwg.mxu0
        %v956 = vsel %vm833, %v950, -inf
        %957 = vmax.xlane.f32.xlu0 %v956
        %v958 = vpop.xlane.xlu0 %957
        %v959 = vsel %vm833, %v953, -inf
        %960 = vmax.xlane.f32.xlu0 %v959
        %v961 = vpop.xlane.xlu0 %960
        %v962 = vsub.f32 %v950, %v958
        %v963 = vsub.f32 %v953, %v961
        %v964 = vmul.f32 %v962, 1.442695
        %v965 = vpow.pop %v964
        %v966 = vmul.f32 %v963, 1.442695
        %v967 = vpow.pop %v966
        %v968 = vsel %vm833, %v965, 0.0
        %969 = vadd.xlane.f32.xlu0 %v968
        %v970 = vpop.xlane.xlu0 %969
        %v971 = vsel %vm833, %v967, 0.0
        %972 = vadd.xlane.f32.xlu0 %v971
        %v973 = vpop.xlane.xlu0 %972
        %v974 = vpack.c.bf16 %v967, %v965
        %976 = vrot.lane.b32.xlu0 %v784, 96
        %v977 = vpop.permute.xlu0 %976
        %v980 = vsel %vm833, %v974, 0
        %982 = vmatprep.subr.bf16.mxu0 0
        %983 = vmatpush1.bf16.msra.mxu0 %v977
        %984 = vmatprep.subr.bf16.mxu0 0
        %985 = vmatpush1.bf16.msra.mxu0 0
        %986 = vmatprep.subr.bf16.mxu0 0
        %987 = vmatpush1.bf16.msra.mxu0 0
        %988 = vmatprep.subr.bf16.mxu0 0
        %989 = vmatpush1.bf16.msra.mxu0 0
        %990 = vmatprep.subr.bf16.mxu0 0
        %991 = vmatpush1.bf16.msra.mxu0 0
        %992 = vmatprep.subr.bf16.mxu0 0
        %993 = vmatpush1.bf16.msra.mxu0 0
        %994 = vmatprep.subr.bf16.mxu0 0
        %995 = vmatpush1.bf16.msra.mxu0 0
        %996 = vmatprep.subr.bf16.mxu0 0
        %997 = vmatpush1.bf16.msra.mxu0 0
        %998 = vmatprep.subr.bf16.mxu0 0
        %999 = vmatpush1.bf16.msra.mxu0 0
        %1000 = vmatprep.subr.bf16.mxu0 0
        %1001 = vmatpush1.bf16.msra.mxu0 0
        %1002 = vmatprep.subr.bf16.mxu0 0
        %1003 = vmatpush1.bf16.msra.mxu0 0
        %1004 = vmatprep.subr.bf16.mxu0 0
        %1005 = vmatpush1.bf16.msra.mxu0 0
        %1006 = vmatprep.subr.bf16.mxu0 0
        %1007 = vmatpush1.bf16.msra.mxu0 0
        %1008 = vmatprep.subr.bf16.mxu0 0
        %1009 = vmatpush1.bf16.msra.mxu0 0
        %1010 = vmatprep.subr.bf16.mxu0 0
        %1011 = vmatpush1.bf16.msra.mxu0 0
        %1012 = vmatprep.subr.bf16.mxu0 0
        %1013 = vmatpush1.bf16.msra.mxu0 0
        %1014 = vmatprep.mubr.bf16.mxu0 0
        %1015 = vmatmul.mubr.bf16.gmra.mrb[0].mxu0 %v980
        %v1016 = vpop.f32.mrb[0].mxu0
        %v1017 = vadd.f32 0.0, %v1016
        %v1018 = vpop.f32.mrb[0].mxu0
        %v1019 = vpop.f32.mrb[0].mxu0
        %v1020 = vadd.f32 0.0, %v1019
        %v1021 = vpop.f32.mrb[0].mxu0
        %1022 = vdwg.mxu0
        %v1023 = vrcp.pop %v970
        %v1024 = vrcp.pop %v973
        %v1025 = vmul.f32 %v1017, %v1023
        %v1026 = vmul.f32 %v1020, %v1024
        %1029 = vrot.lane.b32.xlu0 %v1025, 32
        %v1030 = vpop.permute.xlu0 %1029
        %1031 = vrot.lane.b32.xlu0 %v1026, 32
        %v1032 = vpop.permute.xlu0 %1031
        %vm1035 = vcmask 523520
        %1036 = vst.msk [vmem:[#allocation2] sm:$0xff] %vm1035, %v1030
        %1037 = vst.msk [vmem:[#allocation2 + $0x8] sm:$0xff] %vm1035, %v1032
        %1038 = vrot.lane.b32.xlu0 %v782, 64
        %v1039 = vpop.permute.xlu0 %1038
        %1040 = vrot.lane.b32.xlu0 %v783, 64
        %v1041 = vpop.permute.xlu0 %1040
        %v1043 = vsel %vm785, %v1039, 0
        %v1046 = vsel %vm785, %v1041, 0
        %1048 = vmatprep.subr.bf16.mxu0 0
        %1049 = vmatpush1.bf16.xpose.msra.mxu0 %v1046
        %1050 = vmatprep.subr.bf16.mxu0 0
        %1051 = vmatpush1.bf16.xpose.msra.mxu0 0
        %1052 = vmatprep.subr.bf16.mxu0 0
        %1053 = vmatpush1.bf16.xpose.msra.mxu0 0
        %1054 = vmatprep.subr.bf16.mxu0 0
        %1055 = vmatpush1.bf16.xpose.msra.mxu0 0
        %1056 = vmatprep.subr.bf16.mxu0 0
        %1057 = vmatpush1.bf16.xpose.msra.mxu0 0
        %1058 = vmatprep.subr.bf16.mxu0 0
        %1059 = vmatpush1.bf16.xpose.msra.mxu0 0
        %1060 = vmatprep.subr.bf16.mxu0 0
        %1061 = vmatpush1.bf16.xpose.msra.mxu0 0
        %1062 = vmatprep.subr.bf16.mxu0 0
        %1063 = vmatpush1.bf16.xpose.msra.mxu0 0
        %1064 = vmatprep.subr.bf16.mxu0 0
        %1065 = vmatpush1.bf16.xpose.msra.mxu0 0
        %1066 = vmatprep.subr.bf16.mxu0 0
        %1067 = vmatpush1.bf16.xpose.msra.mxu0 0
        %1068 = vmatprep.subr.bf16.mxu0 0
        %1069 = vmatpush1.bf16.xpose.msra.mxu0 0
        %1070 = vmatprep.subr.bf16.mxu0 0
        %1071 = vmatpush1.bf16.xpose.msra.mxu0 0
        %1072 = vmatprep.subr.bf16.mxu0 0
        %1073 = vmatpush1.bf16.xpose.msra.mxu0 0
        %1074 = vmatprep.subr.bf16.mxu0 0
        %1075 = vmatpush1.bf16.xpose.msra.mxu0 0
        %1076 = vmatprep.subr.bf16.mxu0 0
        %1077 = vmatpush1.bf16.xpose.msra.mxu0 0
        %1078 = vmatprep.subr.bf16.mxu0 0
        %1079 = vmatpush1.bf16.xpose.msra.mxu0 0
        %1080 = vmatprep.mubr.bf16.mxu0 0
        %1081 = vmatmul.mubr.bf16.gmra.mrb[0].mxu0 %v1043
        %v1082 = vpop.f32.mrb[0].mxu0
        %v1083 = vadd.f32 0.0, %v1082
        %v1084 = vpop.f32.mrb[0].mxu0
        %v1085 = vpop.f32.mrb[0].mxu0
        %v1086 = vadd.f32 0.0, %v1085
        %v1087 = vpop.f32.mrb[0].mxu0
        %1088 = vdwg.mxu0
        %v1089 = vsel %vm833, %v1083, -inf
        %1090 = vmax.xlane.f32.xlu0 %v1089
        %v1091 = vpop.xlane.xlu0 %1090
        %v1092 = vsel %vm833, %v1086, -inf
        %1093 = vmax.xlane.f32.xlu0 %v1092
        %v1094 = vpop.xlane.xlu0 %1093
        %v1095 = vsub.f32 %v1083, %v1091
        %v1096 = vsub.f32 %v1086, %v1094
        %v1097 = vmul.f32 %v1095, 1.442695
        %v1098 = vpow.pop %v1097
        %v1099 = vmul.f32 %v1096, 1.442695
        %v1100 = vpow.pop %v1099
        %v1101 = vsel %vm833, %v1098, 0.0
        %1102 = vadd.xlane.f32.xlu0 %v1101
        %v1103 = vpop.xlane.xlu0 %1102
        %v1104 = vsel %vm833, %v1100, 0.0
        %1105 = vadd.xlane.f32.xlu0 %v1104
        %v1106 = vpop.xlane.xlu0 %1105
        %v1107 = vpack.c.bf16 %v1100, %v1098
        %1108 = vrot.lane.b32.xlu0 %v784, 64
        %v1109 = vpop.permute.xlu0 %1108
        %v1112 = vsel %vm833, %v1107, 0
        %1114 = vmatprep.subr.bf16.mxu0 0
        %1115 = vmatpush1.bf16.msra.mxu0 %v1109
        %1116 = vmatprep.subr.bf16.mxu0 0
        %1117 = vmatpush1.bf16.msra.mxu0 0
        %1118 = vmatprep.subr.bf16.mxu0 0
        %1119 = vmatpush1.bf16.msra.mxu0 0
        %1120 = vmatprep.subr.bf16.mxu0 0
        %1121 = vmatpush1.bf16.msra.mxu0 0
        %1122 = vmatprep.subr.bf16.mxu0 0
        %1123 = vmatpush1.bf16.msra.mxu0 0
        %1124 = vmatprep.subr.bf16.mxu0 0
        %1125 = vmatpush1.bf16.msra.mxu0 0
        %1126 = vmatprep.subr.bf16.mxu0 0
        %1127 = vmatpush1.bf16.msra.mxu0 0
        %1128 = vmatprep.subr.bf16.mxu0 0
        %1129 = vmatpush1.bf16.msra.mxu0 0
        %1130 = vmatprep.subr.bf16.mxu0 0
        %1131 = vmatpush1.bf16.msra.mxu0 0
        %1132 = vmatprep.subr.bf16.mxu0 0
        %1133 = vmatpush1.bf16.msra.mxu0 0
        %1134 = vmatprep.subr.bf16.mxu0 0
        %1135 = vmatpush1.bf16.msra.mxu0 0
        %1136 = vmatprep.subr.bf16.mxu0 0
        %1137 = vmatpush1.bf16.msra.mxu0 0
        %1138 = vmatprep.subr.bf16.mxu0 0
        %1139 = vmatpush1.bf16.msra.mxu0 0
        %1140 = vmatprep.subr.bf16.mxu0 0
        %1141 = vmatpush1.bf16.msra.mxu0 0
        %1142 = vmatprep.subr.bf16.mxu0 0
        %1143 = vmatpush1.bf16.msra.mxu0 0
        %1144 = vmatprep.subr.bf16.mxu0 0
        %1145 = vmatpush1.bf16.msra.mxu0 0
        %1146 = vmatprep.mubr.bf16.mxu0 0
        %1147 = vmatmul.mubr.bf16.gmra.mrb[0].mxu0 %v1112
        %v1148 = vpop.f32.mrb[0].mxu0
        %v1149 = vadd.f32 0.0, %v1148
        %v1150 = vpop.f32.mrb[0].mxu0
        %v1151 = vpop.f32.mrb[0].mxu0
        %v1152 = vadd.f32 0.0, %v1151
        %v1153 = vpop.f32.mrb[0].mxu0
        %1154 = vdwg.mxu0
        %v1155 = vrcp.pop %v1103
        %v1156 = vrcp.pop %v1106
        %v1157 = vmul.f32 %v1149, %v1155
        %v1158 = vmul.f32 %v1152, %v1156
        %1161 = vrot.lane.b32.xlu0 %v1157, 64
        %v1162 = vpop.permute.xlu0 %1161
        %1163 = vrot.lane.b32.xlu0 %v1158, 64
        %v1164 = vpop.permute.xlu0 %1163
        %vm1167 = vcmask 785920
        %1168 = vst.msk [vmem:[#allocation2] sm:$0xff] %vm1167, %v1162
        %1169 = vst.msk [vmem:[#allocation2 + $0x8] sm:$0xff] %vm1167, %v1164
        %1170 = vrot.lane.b32.xlu0 %v782, 32
        %v1171 = vpop.permute.xlu0 %1170
        %1172 = vrot.lane.b32.xlu0 %v783, 32
        %v1173 = vpop.permute.xlu0 %1172
        %v1175 = vsel %vm785, %v1171, 0
        %v1178 = vsel %vm785, %v1173, 0
        %1180 = vmatprep.subr.bf16.mxu0 0
        %1181 = vmatpush1.bf16.xpose.msra.mxu0 %v1178
        %1182 = vmatprep.subr.bf16.mxu0 0
        %1183 = vmatpush1.bf16.xpose.msra.mxu0 0
        %1184 = vmatprep.subr.bf16.mxu0 0
        %1185 = vmatpush1.bf16.xpose.msra.mxu0 0
        %1186 = vmatprep.subr.bf16.mxu0 0
        %1187 = vmatpush1.bf16.xpose.msra.mxu0 0
        %1188 = vmatprep.subr.bf16.mxu0 0
        %1189 = vmatpush1.bf16.xpose.msra.mxu0 0
        %1190 = vmatprep.subr.bf16.mxu0 0
        %1191 = vmatpush1.bf16.xpose.msra.mxu0 0
        %1192 = vmatprep.subr.bf16.mxu0 0
        %1193 = vmatpush1.bf16.xpose.msra.mxu0 0
        %1194 = vmatprep.subr.bf16.mxu0 0
        %1195 = vmatpush1.bf16.xpose.msra.mxu0 0
        %1196 = vmatprep.subr.bf16.mxu0 0
        %1197 = vmatpush1.bf16.xpose.msra.mxu0 0
        %1198 = vmatprep.subr.bf16.mxu0 0
        %1199 = vmatpush1.bf16.xpose.msra.mxu0 0
        %1200 = vmatprep.subr.bf16.mxu0 0
        %1201 = vmatpush1.bf16.xpose.msra.mxu0 0
        %1202 = vmatprep.subr.bf16.mxu0 0
        %1203 = vmatpush1.bf16.xpose.msra.mxu0 0
        %1204 = vmatprep.subr.bf16.mxu0 0
        %1205 = vmatpush1.bf16.xpose.msra.mxu0 0
        %1206 = vmatprep.subr.bf16.mxu0 0
        %1207 = vmatpush1.bf16.xpose.msra.mxu0 0
        %1208 = vmatprep.subr.bf16.mxu0 0
        %1209 = vmatpush1.bf16.xpose.msra.mxu0 0
        %1210 = vmatprep.subr.bf16.mxu0 0
        %1211 = vmatpush1.bf16.xpose.msra.mxu0 0
        %1212 = vmatprep.mubr.bf16.mxu0 0
        %1213 = vmatmul.mubr.bf16.gmra.mrb[0].mxu0 %v1175
        %v1214 = vpop.f32.mrb[0].mxu0
        %v1215 = vadd.f32 0.0, %v1214
        %v1216 = vpop.f32.mrb[0].mxu0
        %v1217 = vpop.f32.mrb[0].mxu0
        %v1218 = vadd.f32 0.0, %v1217
        %v1219 = vpop.f32.mrb[0].mxu0
        %1220 = vdwg.mxu0
        %v1221 = vsel %vm833, %v1215, -inf
        %1222 = vmax.xlane.f32.xlu0 %v1221
        %v1223 = vpop.xlane.xlu0 %1222
        %v1224 = vsel %vm833, %v1218, -inf
        %1225 = vmax.xlane.f32.xlu0 %v1224
        %v1226 = vpop.xlane.xlu0 %1225
        %v1227 = vsub.f32 %v1215, %v1223
        %v1228 = vsub.f32 %v1218, %v1226
        %v1229 = vmul.f32 %v1227, 1.442695
        %v1230 = vpow.pop %v1229
        %v1231 = vmul.f32 %v1228, 1.442695
        %v1232 = vpow.pop %v1231
        %v1233 = vsel %vm833, %v1230, 0.0
        %1234 = vadd.xlane.f32.xlu0 %v1233
        %v1235 = vpop.xlane.xlu0 %1234
        %v1236 = vsel %vm833, %v1232, 0.0
        %1237 = vadd.xlane.f32.xlu0 %v1236
        %v1238 = vpop.xlane.xlu0 %1237
        %v1239 = vpack.c.bf16 %v1232, %v1230
        %1240 = vrot.lane.b32.xlu0 %v784, 32
        %v1241 = vpop.permute.xlu0 %1240
        %v1244 = vsel %vm833, %v1239, 0
        %1246 = vmatprep.subr.bf16.mxu0 0
        %1247 = vmatpush1.bf16.msra.mxu0 %v1241
        %1248 = vmatprep.subr.bf16.mxu0 0
        %1249 = vmatpush1.bf16.msra.mxu0 0
        %1250 = vmatprep.subr.bf16.mxu0 0
        %1251 = vmatpush1.bf16.msra.mxu0 0
        %1252 = vmatprep.subr.bf16.mxu0 0
        %1253 = vmatpush1.bf16.msra.mxu0 0
        %1254 = vmatprep.subr.bf16.mxu0 0
        %1255 = vmatpush1.bf16.msra.mxu0 0
        %1256 = vmatprep.subr.bf16.mxu0 0
        %1257 = vmatpush1.bf16.msra.mxu0 0
        %1258 = vmatprep.subr.bf16.mxu0 0
        %1259 = vmatpush1.bf16.msra.mxu0 0
        %1260 = vmatprep.subr.bf16.mxu0 0
        %1261 = vmatpush1.bf16.msra.mxu0 0
        %1262 = vmatprep.subr.bf16.mxu0 0
        %1263 = vmatpush1.bf16.msra.mxu0 0
        %1264 = vmatprep.subr.bf16.mxu0 0
        %1265 = vmatpush1.bf16.msra.mxu0 0
        %1266 = vmatprep.subr.bf16.mxu0 0
        %1267 = vmatpush1.bf16.msra.mxu0 0
        %1268 = vmatprep.subr.bf16.mxu0 0
        %1269 = vmatpush1.bf16.msra.mxu0 0
        %1270 = vmatprep.subr.bf16.mxu0 0
        %1271 = vmatpush1.bf16.msra.mxu0 0
        %1272 = vmatprep.subr.bf16.mxu0 0
        %1273 = vmatpush1.bf16.msra.mxu0 0
        %1274 = vmatprep.subr.bf16.mxu0 0
        %1275 = vmatpush1.bf16.msra.mxu0 0
        %1276 = vmatprep.subr.bf16.mxu0 0
        %1277 = vmatpush1.bf16.msra.mxu0 0
        %1278 = vmatprep.mubr.bf16.mxu0 0
        %1279 = vmatmul.mubr.bf16.gmra.mrb[0].mxu0 %v1244
        %v1280 = vpop.f32.mrb[0].mxu0
        %v1281 = vadd.f32 0.0, %v1280
        %v1282 = vpop.f32.mrb[0].mxu0
        %v1283 = vpop.f32.mrb[0].mxu0
        %v1284 = vadd.f32 0.0, %v1283
        %v1285 = vpop.f32.mrb[0].mxu0
        %1286 = vdwg.mxu0
        %v1287 = vrcp.pop %v1235
        %v1288 = vrcp.pop %v1238
        %v1289 = vmul.f32 %v1281, %v1287
        %v1290 = vmul.f32 %v1284, %v1288
        %1293 = vrot.lane.b32.xlu0 %v1289, 96
        %v1294 = vpop.permute.xlu0 %1293
        %1295 = vrot.lane.b32.xlu0 %v1290, 96
        %v1296 = vpop.permute.xlu0 %1295
        %vm1299 = vcmask 1048320
        %1300 = vst.msk [vmem:[#allocation2] sm:$0xff] %vm1299, %v1294
        %1301 = vst.msk [vmem:[#allocation2 + $0x8] sm:$0xff] %vm1299, %v1296
        %v1302 = vld [vmem:[#allocation2] sm:$0xff]
        %v1303 = vld [vmem:[#allocation2 + $0x8] sm:$0xff]
        %v1304 = vpack.c.bf16 %v1303, %v1302
        %v1305 = vld [vmem:[#allocation8] sm:$0xf]
        %v1306 = vld [vmem:[#allocation8 + $0x4] sm:$0xf]
        %v1307 = vld [vmem:[#allocation8 + $0x8] sm:$0xf]
        %v1308 = vld [vmem:[#allocation8 + $0xc] sm:$0xf]
        %v1309 = vld [vmem:[#allocation8 + $0x10] sm:$0xf]
        %v1310 = vld [vmem:[#allocation8 + $0x14] sm:$0xf]
        %v1311 = vld [vmem:[#allocation8 + $0x18] sm:$0xf]
        %v1312 = vld [vmem:[#allocation8 + $0x1c] sm:$0xf]
        %v1313 = vld [vmem:[#allocation8 + $0x20] sm:$0xf]
        %v1314 = vld [vmem:[#allocation8 + $0x24] sm:$0xf]
        %v1315 = vld [vmem:[#allocation8 + $0x28] sm:$0xf]
        %v1316 = vld [vmem:[#allocation8 + $0x2c] sm:$0xf]
        %v1317 = vld [vmem:[#allocation8 + $0x30] sm:$0xf]
        %v1318 = vld [vmem:[#allocation8 + $0x34] sm:$0xf]
        %v1319 = vld [vmem:[#allocation8 + $0x38] sm:$0xf]
        %v1320 = vld [vmem:[#allocation8 + $0x3c] sm:$0xf]
        %v1321 = vld [vmem:[%s4] sm:$0x1]
        %v1323 = vlaneseq
        %v1324 = vshrl.u32 %v1323, 7
        %v1325 = vsub.s32 0, %v1324
        %v1326 = vrot.slane %v1321, %v1325
        %v1344 = vunpack.c.l.b16 %v1305
        %v1345 = vunpack.c.l.b16 %v1306
        %v1346 = vunpack.c.l.b16 %v1307
        %v1347 = vunpack.c.l.b16 %v1308
        %v1348 = vunpack.c.l.b16 %v1309
        %v1349 = vunpack.c.l.b16 %v1310
        %v1350 = vunpack.c.l.b16 %v1311
        %v1351 = vunpack.c.l.b16 %v1312
        %v1352 = vunpack.c.l.b16 %v1313
        %v1353 = vunpack.c.l.b16 %v1314
        %v1354 = vunpack.c.l.b16 %v1315
        %v1355 = vunpack.c.l.b16 %v1316
        %v1356 = vunpack.c.l.b16 %v1317
        %v1357 = vunpack.c.l.b16 %v1318
        %v1358 = vunpack.c.l.b16 %v1319
        %v1359 = vunpack.c.l.b16 %v1320
        %v1360 = vpack.c.b16 %v1345, %v1344
        %v1361 = vpack.c.b16 %v1347, %v1346
        %v1362 = vpack.c.b16 %v1349, %v1348
        %v1363 = vpack.c.b16 %v1351, %v1350
        %v1364 = vpack.c.b16 %v1353, %v1352
        %v1365 = vpack.c.b16 %v1355, %v1354
        %v1366 = vpack.c.b16 %v1357, %v1356
        %v1367 = vpack.c.b16 %v1359, %v1358
        %1376 = vmatprep.subr.bf16.mxu0 0
        %1377 = vmatpush1.bf16.msra.mxu0 %v1360
        %1378 = vmatprep.subr.bf16.mxu0 0
        %1379 = vmatpush1.bf16.msra.mxu0 %v1361
        %1380 = vmatprep.subr.bf16.mxu0 0
        %1381 = vmatpush1.bf16.msra.mxu0 %v1362
        %1382 = vmatprep.subr.bf16.mxu0 0
        %1383 = vmatpush1.bf16.msra.mxu0 %v1363
        %1384 = vmatprep.subr.bf16.mxu0 0
        %1385 = vmatpush1.bf16.msra.mxu0 %v1364
        %1386 = vmatprep.subr.bf16.mxu0 0
        %1387 = vmatpush1.bf16.msra.mxu0 %v1365
        %1388 = vmatprep.subr.bf16.mxu0 0
        %1389 = vmatpush1.bf16.msra.mxu0 %v1366
        %1390 = vmatprep.subr.bf16.mxu0 0
        %1391 = vmatpush1.bf16.msra.mxu0 %v1367
        %1392 = vmatprep.subr.bf16.mxu0 0
        %1393 = vmatpush1.bf16.msra.mxu0 0
        %1394 = vmatprep.subr.bf16.mxu0 0
        %1395 = vmatpush1.bf16.msra.mxu0 0
        %1396 = vmatprep.subr.bf16.mxu0 0
        %1397 = vmatpush1.bf16.msra.mxu0 0
        %1398 = vmatprep.subr.bf16.mxu0 0
        %1399 = vmatpush1.bf16.msra.mxu0 0
        %1400 = vmatprep.subr.bf16.mxu0 0
        %1401 = vmatpush1.bf16.msra.mxu0 0
        %1402 = vmatprep.subr.bf16.mxu0 0
        %1403 = vmatpush1.bf16.msra.mxu0 0
        %1404 = vmatprep.subr.bf16.mxu0 0
        %1405 = vmatpush1.bf16.msra.mxu0 0
        %1406 = vmatprep.subr.bf16.mxu0 0
        %1407 = vmatpush1.bf16.msra.mxu0 0
        %1408 = vmatprep.mubr.bf16.mxu0 0
        %1409 = vmatmul.mubr.bf16.gmra.mrb[0].mxu0 %v1304
        %v1410 = vpop.f32.mrb[0].mxu0
        %v1411 = vadd.f32 %v1326, %v1410
        %v1412 = vpop.f32.mrb[0].mxu0
        %v1413 = vpop.f32.mrb[0].mxu0
        %v1414 = vadd.f32 %v1326, %v1413
        %v1415 = vpop.f32.mrb[0].mxu0
        %1416 = vdwg.mxu0
        %v1417 = vadd.f32 %v518, %v1411
        %v1418 = vadd.f32 %v519, %v1414
        %v1419 = vld [vmem:[%s5] sm:$0x1]
        %v1420 = vld [vmem:[%s6] sm:$0x1]
        %1421 = vadd.xlane.f32.xlu0 %v1417
        %v1422 = vpop.xlane.xlu0 %1421
        %1423 = vadd.xlane.f32.xlu0 %v1418
        %v1424 = vpop.xlane.xlu0 %1423
        %v1425 = vrcp.pop 128.0
        %v1426 = vmul.f32 %v1422, %v1425
        %v1427 = vmul.f32 %v1424, %v1425
        %v1428 = vsub.f32 %v1417, %v1426
        %v1429 = vsub.f32 %v1418, %v1427
        %v1430 = vmul.f32 %v1428, %v1428
        %v1431 = vmul.f32 %v1429, %v1429
        %1432 = vadd.xlane.f32.xlu0 %v1430
        %v1433 = vpop.xlane.xlu0 %1432
        %1434 = vadd.xlane.f32.xlu0 %v1431
        %v1435 = vpop.xlane.xlu0 %1434
        %v1436 = vmul.f32 %v1433, %v1425
        %v1437 = vmul.f32 %v1435, %v1425
        %v1438 = vadd.f32 %v1436, 1e-05
        %v1439 = vadd.f32 %v1437, 1e-05
        %v1440 = vrsqrt.pop %v1438
        %v1441 = vrsqrt.pop %v1439
        %v1442 = vmul.f32 %v1428, %v1440
        %v1443 = vmul.f32 %v1429, %v1441
        %v1445 = vlaneseq
        %v1446 = vshrl.u32 %v1445, 7
        %v1447 = vsub.s32 0, %v1446
        %v1448 = vrot.slane %v1419, %v1447
        %v1450 = vmul.f32 %v1442, %v1448
        %v1451 = vmul.f32 %v1443, %v1448
        %v1453 = vlaneseq
        %v1454 = vshrl.u32 %v1453, 7
        %v1455 = vsub.s32 0, %v1454
        %v1456 = vrot.slane %v1420, %v1455
        %v1458 = vadd.f32 %v1450, %v1456
        %v1459 = vadd.f32 %v1451, %v1456
        %v1460 = vpack.c.bf16 %v1459, %v1458
        %v1461 = vld [vmem:[#allocation9] sm:$0xff]
        %v1462 = vld [vmem:[#allocation9 + $0x8] sm:$0xff]
        %v1463 = vld [vmem:[#allocation9 + $0x10] sm:$0xff]
        %v1464 = vld [vmem:[#allocation9 + $0x18] sm:$0xff]
        %v1465 = vld [vmem:[#allocation9 + $0x20] sm:$0xff]
        %v1466 = vld [vmem:[#allocation9 + $0x28] sm:$0xff]
        %v1467 = vld [vmem:[#allocation9 + $0x30] sm:$0xff]
        %v1468 = vld [vmem:[#allocation9 + $0x38] sm:$0xff]
        %v1469 = vld [vmem:[#allocation9 + $0x40] sm:$0xff]
        %v1470 = vld [vmem:[#allocation9 + $0x48] sm:$0xff]
        %v1471 = vld [vmem:[#allocation9 + $0x50] sm:$0xff]
        %v1472 = vld [vmem:[#allocation9 + $0x58] sm:$0xff]
        %v1473 = vld [vmem:[#allocation9 + $0x60] sm:$0xff]
        %v1474 = vld [vmem:[#allocation9 + $0x68] sm:$0xff]
        %v1475 = vld [vmem:[#allocation9 + $0x70] sm:$0xff]
        %v1476 = vld [vmem:[#allocation9 + $0x78] sm:$0xff]
        %v1477 = vld [vmem:[%s8] sm:$0x3]
        %v1479 = vlaneseq
        %v1480 = vshrl.u32 %v1479, 7
        %v1481 = vsub.s32 0, %v1480
        %v1482 = vrot.slane %v1477, %v1481
        %v1483 = vlaneseq
        %v1484 = vshrl.u32 %v1483, 7
        %v1485 = vsub.s32 1, %v1484
        %v1486 = vrot.slane %v1477, %v1485
        %v1505 = vunpack.c.l.b16 %v1461
        %v1506 = vunpack.c.h.b16 %v1461
        %v1507 = vunpack.c.l.b16 %v1462
        %v1508 = vunpack.c.h.b16 %v1462
        %v1509 = vunpack.c.l.b16 %v1463
        %v1510 = vunpack.c.h.b16 %v1463
        %v1511 = vunpack.c.l.b16 %v1464
        %v1512 = vunpack.c.h.b16 %v1464
        %v1513 = vunpack.c.l.b16 %v1465
        %v1514 = vunpack.c.h.b16 %v1465
        %v1515 = vunpack.c.l.b16 %v1466
        %v1516 = vunpack.c.h.b16 %v1466
        %v1517 = vunpack.c.l.b16 %v1467
        %v1518 = vunpack.c.h.b16 %v1467
        %v1519 = vunpack.c.l.b16 %v1468
        %v1520 = vunpack.c.h.b16 %v1468
        %v1521 = vunpack.c.l.b16 %v1469
        %v1522 = vunpack.c.h.b16 %v1469
        %v1523 = vunpack.c.l.b16 %v1470
        %v1524 = vunpack.c.h.b16 %v1470
        %v1525 = vunpack.c.l.b16 %v1471
        %v1526 = vunpack.c.h.b16 %v1471
        %v1527 = vunpack.c.l.b16 %v1472
        %v1528 = vunpack.c.h.b16 %v1472
        %v1529 = vunpack.c.l.b16 %v1473
        %v1530 = vunpack.c.h.b16 %v1473
        %v1531 = vunpack.c.l.b16 %v1474
        %v1532 = vunpack.c.h.b16 %v1474
        %v1533 = vunpack.c.l.b16 %v1475
        %v1534 = vunpack.c.h.b16 %v1475
        %v1535 = vunpack.c.l.b16 %v1476
        %v1536 = vunpack.c.h.b16 %v1476
        %v1537 = vpack.c.b16 %v1507, %v1505
        %v1538 = vpack.c.b16 %v1508, %v1506
        %v1539 = vpack.c.b16 %v1511, %v1509
        %v1540 = vpack.c.b16 %v1512, %v1510
        %v1541 = vpack.c.b16 %v1515, %v1513
        %v1542 = vpack.c.b16 %v1516, %v1514
        %v1543 = vpack.c.b16 %v1519, %v1517
        %v1544 = vpack.c.b16 %v1520, %v1518
        %v1545 = vpack.c.b16 %v1523, %v1521
        %v1546 = vpack.c.b16 %v1524, %v1522
        %v1547 = vpack.c.b16 %v1527, %v1525
        %v1548 = vpack.c.b16 %v1528, %v1526
        %v1549 = vpack.c.b16 %v1531, %v1529
        %v1550 = vpack.c.b16 %v1532, %v1530
        %v1551 = vpack.c.b16 %v1535, %v1533
        %v1552 = vpack.c.b16 %v1536, %v1534
        %1569 = vmatprep.subr.bf16.mxu0 %v1538
        %1570 = vmatpush1.bf16.msra.mxu0 %v1537
        %1571 = vmatprep.subr.bf16.mxu0 %v1540
        %1572 = vmatpush1.bf16.msra.mxu0 %v1539
        %1573 = vmatprep.subr.bf16.mxu0 %v1542
        %1574 = vmatpush1.bf16.msra.mxu0 %v1541
        %1575 = vmatprep.subr.bf16.mxu0 %v1544
        %1576 = vmatpush1.bf16.msra.mxu0 %v1543
        %1577 = vmatprep.subr.bf16.mxu0 %v1546
        %1578 = vmatpush1.bf16.msra.mxu0 %v1545
        %1579 = vmatprep.subr.bf16.mxu0 %v1548
        %1580 = vmatpush1.bf16.msra.mxu0 %v1547
        %1581 = vmatprep.subr.bf16.mxu0 %v1550
        %1582 = vmatpush1.bf16.msra.mxu0 %v1549
        %1583 = vmatprep.subr.bf16.mxu0 %v1552
        %1584 = vmatpush1.bf16.msra.mxu0 %v1551
        %1585 = vmatprep.subr.bf16.mxu0 0
        %1586 = vmatpush1.bf16.msra.mxu0 0
        %1587 = vmatprep.subr.bf16.mxu0 0
        %1588 = vmatpush1.bf16.msra.mxu0 0
        %1589 = vmatprep.subr.bf16.mxu0 0
        %1590 = vmatpush1.bf16.msra.mxu0 0
        %1591 = vmatprep.subr.bf16.mxu0 0
        %1592 = vmatpush1.bf16.msra.mxu0 0
        %1593 = vmatprep.subr.bf16.mxu0 0
        %1594 = vmatpush1.bf16.msra.mxu0 0
        %1595 = vmatprep.subr.bf16.mxu0 0
        %1596 = vmatpush1.bf16.msra.mxu0 0
        %1597 = vmatprep.subr.bf16.mxu0 0
        %1598 = vmatpush1.bf16.msra.mxu0 0
        %1599 = vmatprep.subr.bf16.mxu0 0
        %1600 = vmatpush1.bf16.msra.mxu0 0
        %1601 = vmatprep.mubr.bf16.mxu0 0
        %1602 = vmatmul.mubr.bf16.gmra.mrb[0].mxu0 %v1460
        %v1603 = vpop.f32.mrb[0].mxu0
        %v1604 = vadd.f32 %v1482, %v1603
        %v1605 = vpop.f32.mrb[0].mxu0
        %v1606 = vadd.f32 %v1486, %v1605
        %v1607 = vpop.f32.mrb[0].mxu0
        %v1608 = vadd.f32 %v1482, %v1607
        %v1609 = vpop.f32.mrb[0].mxu0
        %v1610 = vadd.f32 %v1486, %v1609
        %1611 = vdwg.mxu0
        %v1612 = vmul.f32 %v1604, 0.5
        %v1613 = vmul.f32 %v1606, 0.5
        %v1614 = vmul.f32 %v1608, 0.5
        %v1615 = vmul.f32 %v1610, 0.5
        %v1616 = vmul.f32 %v1604, 0.70710677
        %v1617 = vmul.f32 %v1606, 0.70710677
        %v1618 = vmul.f32 %v1608, 0.70710677
        %v1619 = vmul.f32 %v1610, 0.70710677
        %v1620 = vand.u32 2147483647, %v1616
        %v1621 = vand.u32 2147483647, %v1617
        %v1622 = vand.u32 2147483647, %v1618
        %v1623 = vand.u32 2147483647, %v1619
        %v1624 = vmul.f32 %v1620, 0.3275911
        %v1625 = vmul.f32 %v1621, 0.3275911
        %v1626 = vmul.f32 %v1622, 0.3275911
        %v1627 = vmul.f32 %v1623, 0.3275911
        %v1628 = vadd.f32 %v1624, 1.0
        %v1629 = vadd.f32 %v1625, 1.0
        %v1630 = vadd.f32 %v1626, 1.0
        %v1631 = vadd.f32 %v1627, 1.0
        %v1632 = vrcp.pop %v1628
        %v1633 = vmul.f32 1.0, %v1632
        %v1634 = vrcp.pop %v1629
        %v1635 = vmul.f32 1.0, %v1634
        %v1636 = vrcp.pop %v1630
        %v1637 = vmul.f32 1.0, %v1636
        %v1638 = vrcp.pop %v1631
        %v1639 = vmul.f32 1.0, %v1638
        %v1640 = vmul.f32 %v1633, 1.0614054
        %v1641 = vmul.f32 %v1635, 1.0614054
        %v1642 = vmul.f32 %v1637, 1.0614054
        %v1643 = vmul.f32 %v1639, 1.0614054
        %v1644 = vadd.f32 %v1640, -1.4531521
        %v1645 = vadd.f32 %v1641, -1.4531521
        %v1646 = vadd.f32 %v1642, -1.4531521
        %v1647 = vadd.f32 %v1643, -1.4531521
        %v1648 = vmul.f32 %v1644, %v1633
        %v1649 = vmul.f32 %v1645, %v1635
        %v1650 = vmul.f32 %v1646, %v1637
        %v1651 = vmul.f32 %v1647, %v1639
        %v1652 = vadd.f32 %v1648, 1.4214138
        %v1653 = vadd.f32 %v1649, 1.4214138
        %v1654 = vadd.f32 %v1650, 1.4214138
        %v1655 = vadd.f32 %v1651, 1.4214138
        %v1656 = vmul.f32 %v1652, %v1633
        %v1657 = vmul.f32 %v1653, %v1635
        %v1658 = vmul.f32 %v1654, %v1637
        %v1659 = vmul.f32 %v1655, %v1639
        %v1660 = vadd.f32 %v1656, -0.28449672
        %v1661 = vadd.f32 %v1657, -0.28449672
        %v1662 = vadd.f32 %v1658, -0.28449672
        %v1663 = vadd.f32 %v1659, -0.28449672
        %v1664 = vmul.f32 %v1660, %v1633
        %v1665 = vmul.f32 %v1661, %v1635
        %v1666 = vmul.f32 %v1662, %v1637
        %v1667 = vmul.f32 %v1663, %v1639
        %v1668 = vadd.f32 %v1664, 0.2548296
        %v1669 = vadd.f32 %v1665, 0.2548296
        %v1670 = vadd.f32 %v1666, 0.2548296
        %v1671 = vadd.f32 %v1667, 0.2548296
        %v1672 = vmul.f32 %v1668, %v1633
        %v1673 = vmul.f32 %v1669, %v1635
        %v1674 = vmul.f32 %v1670, %v1637
        %v1675 = vmul.f32 %v1671, %v1639
        %v1676 = vsub.f32 0.0, %v1620
        %v1677 = vsub.f32 0.0, %v1621
        %v1678 = vsub.f32 0.0, %v1622
        %v1679 = vsub.f32 0.0, %v1623
        %v1680 = vmul.f32 %v1676, %v1620
        %v1681 = vmul.f32 %v1677, %v1621
        %v1682 = vmul.f32 %v1678, %v1622
        %v1683 = vmul.f32 %v1679, %v1623
        %v1684 = vmul.f32 %v1680, 1.442695
        %v1685 = vpow.pop %v1684
        %v1686 = vmul.f32 %v1681, 1.442695
        %v1687 = vpow.pop %v1686
        %v1688 = vmul.f32 %v1682, 1.442695
        %v1689 = vpow.pop %v1688
        %v1690 = vmul.f32 %v1683, 1.442695
        %v1691 = vpow.pop %v1690
        %v1692 = vmul.f32 %v1672, %v1685
        %v1693 = vmul.f32 %v1673, %v1687
        %v1694 = vmul.f32 %v1674, %v1689
        %v1695 = vmul.f32 %v1675, %v1691
        %v1696 = vsub.f32 1.0, %v1692
        %v1697 = vsub.f32 1.0, %v1693
        %v1698 = vsub.f32 1.0, %v1694
        %v1699 = vsub.f32 1.0, %v1695
        %vm1700 = vcmp.ge.f32.partialorder %v1616, 0.0
        %vm1701 = vcmp.ge.f32.partialorder %v1617, 0.0
        %vm1702 = vcmp.ge.f32.partialorder %v1618, 0.0
        %vm1703 = vcmp.ge.f32.partialorder %v1619, 0.0
        %v1704 = vsub.f32 0.0, %v1696
        %v1705 = vsub.f32 0.0, %v1697
        %v1706 = vsub.f32 0.0, %v1698
        %v1707 = vsub.f32 0.0, %v1699
        %v1708 = vsel %vm1700, %v1696, %v1704
        %v1709 = vsel %vm1701, %v1697, %v1705
        %v1710 = vsel %vm1702, %v1698, %v1706
        %v1711 = vsel %vm1703, %v1699, %v1707
        %v1712 = vadd.f32 %v1708, 1.0
        %v1713 = vadd.f32 %v1709, 1.0
        %v1714 = vadd.f32 %v1710, 1.0
        %v1715 = vadd.f32 %v1711, 1.0
        %v1716 = vmul.f32 %v1612, %v1712
        %v1717 = vmul.f32 %v1613, %v1713
        %v1718 = vmul.f32 %v1614, %v1714
        %v1719 = vmul.f32 %v1615, %v1715
        %v1720 = vpack.c.bf16 %v1718, %v1716
        %v1721 = vpack.c.bf16 %v1719, %v1717
        %v1722 = vld [vmem:[#allocation11] sm:$0xf]
        %v1723 = vld [vmem:[#allocation11 + $0x4] sm:$0xf]
        %v1724 = vld [vmem:[#allocation11 + $0x8] sm:$0xf]
        %v1725 = vld [vmem:[#allocation11 + $0xc] sm:$0xf]
        %v1726 = vld [vmem:[#allocation11 + $0x10] sm:$0xf]
        %v1727 = vld [vmem:[#allocation11 + $0x14] sm:$0xf]
        %v1728 = vld [vmem:[#allocation11 + $0x18] sm:$0xf]
        %v1729 = vld [vmem:[#allocation11 + $0x1c] sm:$0xf]
        %v1730 = vld [vmem:[#allocation11 + $0x20] sm:$0xf]
        %v1731 = vld [vmem:[#allocation11 + $0x24] sm:$0xf]
        %v1732 = vld [vmem:[#allocation11 + $0x28] sm:$0xf]
        %v1733 = vld [vmem:[#allocation11 + $0x2c] sm:$0xf]
        %v1734 = vld [vmem:[#allocation11 + $0x30] sm:$0xf]
        %v1735 = vld [vmem:[#allocation11 + $0x34] sm:$0xf]
        %v1736 = vld [vmem:[#allocation11 + $0x38] sm:$0xf]
        %v1737 = vld [vmem:[#allocation11 + $0x3c] sm:$0xf]
        %v1738 = vld [vmem:[#allocation11 + $0x40] sm:$0xf]
        %v1739 = vld [vmem:[#allocation11 + $0x44] sm:$0xf]
        %v1740 = vld [vmem:[#allocation11 + $0x48] sm:$0xf]
        %v1741 = vld [vmem:[#allocation11 + $0x4c] sm:$0xf]
        %v1742 = vld [vmem:[#allocation11 + $0x50] sm:$0xf]
        %v1743 = vld [vmem:[#allocation11 + $0x54] sm:$0xf]
        %v1744 = vld [vmem:[#allocation11 + $0x58] sm:$0xf]
        %v1745 = vld [vmem:[#allocation11 + $0x5c] sm:$0xf]
        %v1746 = vld [vmem:[#allocation11 + $0x60] sm:$0xf]
        %v1747 = vld [vmem:[#allocation11 + $0x64] sm:$0xf]
        %v1748 = vld [vmem:[#allocation11 + $0x68] sm:$0xf]
        %v1749 = vld [vmem:[#allocation11 + $0x6c] sm:$0xf]
        %v1750 = vld [vmem:[#allocation11 + $0x70] sm:$0xf]
        %v1751 = vld [vmem:[#allocation11 + $0x74] sm:$0xf]
        %v1752 = vld [vmem:[#allocation11 + $0x78] sm:$0xf]
        %v1753 = vld [vmem:[#allocation11 + $0x7c] sm:$0xf]
        %v1754 = vld [vmem:[%s10] sm:$0x1]
        %v1756 = vlaneseq
        %v1757 = vshrl.u32 %v1756, 7
        %v1758 = vsub.s32 0, %v1757
        %v1759 = vrot.slane %v1754, %v1758
        %v1793 = vunpack.c.l.b16 %v1722
        %v1794 = vunpack.c.l.b16 %v1723
        %v1795 = vunpack.c.l.b16 %v1724
        %v1796 = vunpack.c.l.b16 %v1725
        %v1797 = vunpack.c.l.b16 %v1726
        %v1798 = vunpack.c.l.b16 %v1727
        %v1799 = vunpack.c.l.b16 %v1728
        %v1800 = vunpack.c.l.b16 %v1729
        %v1801 = vunpack.c.l.b16 %v1730
        %v1802 = vunpack.c.l.b16 %v1731
        %v1803 = vunpack.c.l.b16 %v1732
        %v1804 = vunpack.c.l.b16 %v1733
        %v1805 = vunpack.c.l.b16 %v1734
        %v1806 = vunpack.c.l.b16 %v1735
        %v1807 = vunpack.c.l.b16 %v1736
        %v1808 = vunpack.c.l.b16 %v1737
        %v1809 = vunpack.c.l.b16 %v1738
        %v1810 = vunpack.c.l.b16 %v1739
        %v1811 = vunpack.c.l.b16 %v1740
        %v1812 = vunpack.c.l.b16 %v1741
        %v1813 = vunpack.c.l.b16 %v1742
        %v1814 = vunpack.c.l.b16 %v1743
        %v1815 = vunpack.c.l.b16 %v1744
        %v1816 = vunpack.c.l.b16 %v1745
        %v1817 = vunpack.c.l.b16 %v1746
        %v1818 = vunpack.c.l.b16 %v1747
        %v1819 = vunpack.c.l.b16 %v1748
        %v1820 = vunpack.c.l.b16 %v1749
        %v1821 = vunpack.c.l.b16 %v1750
        %v1822 = vunpack.c.l.b16 %v1751
        %v1823 = vunpack.c.l.b16 %v1752
        %v1824 = vunpack.c.l.b16 %v1753
        %v1825 = vpack.c.b16 %v1794, %v1793
        %v1826 = vpack.c.b16 %v1796, %v1795
        %v1827 = vpack.c.b16 %v1798, %v1797
        %v1828 = vpack.c.b16 %v1800, %v1799
        %v1829 = vpack.c.b16 %v1802, %v1801
        %v1830 = vpack.c.b16 %v1804, %v1803
        %v1831 = vpack.c.b16 %v1806, %v1805
        %v1832 = vpack.c.b16 %v1808, %v1807
        %v1833 = vpack.c.b16 %v1810, %v1809
        %v1834 = vpack.c.b16 %v1812, %v1811
        %v1835 = vpack.c.b16 %v1814, %v1813
        %v1836 = vpack.c.b16 %v1816, %v1815
        %v1837 = vpack.c.b16 %v1818, %v1817
        %v1838 = vpack.c.b16 %v1820, %v1819
        %v1839 = vpack.c.b16 %v1822, %v1821
        %v1840 = vpack.c.b16 %v1824, %v1823
        %1857 = vmatprep.subr.bf16.mxu0 0
        %1858 = vmatpush1.bf16.msra.mxu0 %v1825
        %1859 = vmatprep.subr.bf16.mxu0 0
        %1860 = vmatpush1.bf16.msra.mxu0 %v1826
        %1861 = vmatprep.subr.bf16.mxu0 0
        %1862 = vmatpush1.bf16.msra.mxu0 %v1827
        %1863 = vmatprep.subr.bf16.mxu0 0
        %1864 = vmatpush1.bf16.msra.mxu0 %v1828
        %1865 = vmatprep.subr.bf16.mxu0 0
        %1866 = vmatpush1.bf16.msra.mxu0 %v1829
        %1867 = vmatprep.subr.bf16.mxu0 0
        %1868 = vmatpush1.bf16.msra.mxu0 %v1830
        %1869 = vmatprep.subr.bf16.mxu0 0
        %1870 = vmatpush1.bf16.msra.mxu0 %v1831
        %1871 = vmatprep.subr.bf16.mxu0 0
        %1872 = vmatpush1.bf16.msra.mxu0 %v1832
        %1873 = vmatprep.subr.bf16.mxu0 0
        %1874 = vmatpush1.bf16.msra.mxu0 %v1833
        %1875 = vmatprep.subr.bf16.mxu0 0
        %1876 = vmatpush1.bf16.msra.mxu0 %v1834
        %1877 = vmatprep.subr.bf16.mxu0 0
        %1878 = vmatpush1.bf16.msra.mxu0 %v1835
        %1879 = vmatprep.subr.bf16.mxu0 0
        %1880 = vmatpush1.bf16.msra.mxu0 %v1836
        %1881 = vmatprep.subr.bf16.mxu0 0
        %1882 = vmatpush1.bf16.msra.mxu0 %v1837
        %1883 = vmatprep.subr.bf16.mxu0 0
        %1884 = vmatpush1.bf16.msra.mxu0 %v1838
        %1885 = vmatprep.subr.bf16.mxu0 0
        %1886 = vmatpush1.bf16.msra.mxu0 %v1839
        %1887 = vmatprep.subr.bf16.mxu0 0
        %1888 = vmatpush1.bf16.msra.mxu0 %v1840
        %1889 = vmatprep.mubr.bf16.mxu0 %v1721
        %1890 = vmatmul.mubr.bf16.gmra.mrb[0].mxu0 %v1720
        %v1891 = vpop.f32.mrb[0].mxu0
        %v1892 = vadd.f32 %v1759, %v1891
        %v1893 = vpop.f32.mrb[0].mxu0
        %v1894 = vpop.f32.mrb[0].mxu0
        %v1895 = vadd.f32 %v1759, %v1894
        %v1896 = vpop.f32.mrb[0].mxu0
        %1897 = vdwg.mxu0
        %v1898 = vadd.f32 %v1458, %v1892
        %v1899 = vadd.f32 %v1459, %v1895
        %v1900 = vld [vmem:[%s11] sm:$0x1]
        %v1901 = vld [vmem:[%s12] sm:$0x1]
        %1902 = vadd.xlane.f32.xlu0 %v1898
        %v1903 = vpop.xlane.xlu0 %1902
        %1904 = vadd.xlane.f32.xlu0 %v1899
        %v1905 = vpop.xlane.xlu0 %1904
        %v1906 = vmul.f32 %v1903, %v1425
        %v1907 = vmul.f32 %v1905, %v1425
        %v1908 = vsub.f32 %v1898, %v1906
        %v1909 = vsub.f32 %v1899, %v1907
        %v1910 = vmul.f32 %v1908, %v1908
        %v1911 = vmul.f32 %v1909, %v1909
        %1912 = vadd.xlane.f32.xlu0 %v1910
        %v1913 = vpop.xlane.xlu0 %1912
        %1914 = vadd.xlane.f32.xlu0 %v1911
        %v1915 = vpop.xlane.xlu0 %1914
        %v1916 = vmul.f32 %v1913, %v1425
        %v1917 = vmul.f32 %v1915, %v1425
        %v1918 = vadd.f32 %v1916, 1e-05
        %v1919 = vadd.f32 %v1917, 1e-05
        %v1920 = vrsqrt.pop %v1918
        %v1921 = vrsqrt.pop %v1919
        %v1922 = vmul.f32 %v1908, %v1920
        %v1923 = vmul.f32 %v1909, %v1921
        %v1925 = vlaneseq
        %v1926 = vshrl.u32 %v1925, 7
        %v1927 = vsub.s32 0, %v1926
        %v1928 = vrot.slane %v1900, %v1927
        %v1930 = vmul.f32 %v1922, %v1928
        %v1931 = vmul.f32 %v1923, %v1928
        %v1933 = vlaneseq
        %v1934 = vshrl.u32 %v1933, 7
        %v1935 = vsub.s32 0, %v1934
        %v1936 = vrot.slane %v1901, %v1935
        %v1938 = vadd.f32 %v1930, %v1936
        %v1939 = vadd.f32 %v1931, %v1936
        %1940 = vst [vmem:[%s516] sm:$0xff] %v1938
        %1941 = vst [vmem:[%s516 + $0x8] sm:$0xff] %v1939
        %s1942 = sand.u32 %s318, 1
        %s1943 = scalar_lea.sflag [#allocation5], %s1942
        %s1944 = sand.u32 %s318, 1
        %s1945 = smul.addr %s1944, 16
        %s1946 = scalar_lea.vmem [#allocation12], %s1945
        // Predicated region
        $region93: #{tpu_custom_call.1} parent=71 // pred_check
          %p1947 = pneg %p328
        $region94: #{tpu_custom_call.1} parent=71 // pred_check_branch
          %1949 = sbr.rel (%p1947) target = $region96
        $region95: #{tpu_custom_call.1} parent=71 // pred_region
          %s1951 = ssub.s32 256, 256
          %1952 = vsyncadd %s1943, %s1951
          %s1953 = smul.addr %s32, 2
          %s1954 = smul.addr %s1953, 128
          %s1955 = scalar_lea.hbm %s13, %s1954
          %s1956 = sshll.u32 %s1946, 4
          %s1957 = int_to_ptr.vmem [resolvable:$true] %s1956
          %1962 = dma.vmem_to_hbm [thread:$0]  %s1957, 256, %s1955, %s1943, 128, 128, 8
        $region96: #{tpu_custom_call.1} parent=71 // pred_fallthru
          _
      $region72: #{tpu_custom_call.1} parent=5 // pred_fallthru
        _
      %p1963 = scmp.le.s32.totalorder 2, %s27
      // Predicated region
      $region97: #{tpu_custom_call.1} parent=5 // pred_check
        %p1964 = pneg %p1963
      $region98: #{tpu_custom_call.1} parent=5 // pred_check_branch
        %1966 = sbr.rel (%p1964) target = $region100
      $region99: #{tpu_custom_call.1} parent=5 // pred_region
        %s1967 = ssub.s32 %s27, 2
        // Predicated region
        $region101: #{tpu_custom_call.1} parent=99 // pred_check
          %p1968 = pneg %p334
        $region102: #{tpu_custom_call.1} parent=99 // pred_check_branch
          %1970 = sbr.rel (%p1968) target = $region104
        $region103: #{tpu_custom_call.1} parent=99 // pred_region
          %s1971 = sand.u32 %s319, 1
          %s1972 = scalar_lea.sflag [#allocation5], %s1971
          %s1973 = sand.u32 %s319, 1
          %s1974 = smul.addr %s1973, 16
          %s1975 = scalar_lea.vmem [#allocation12], %s1974
          %1976 = dma.done %s1972, 256
        $region104: #{tpu_custom_call.1} parent=99 // pred_fallthru
          _
      $region100: #{tpu_custom_call.1} parent=5 // pred_fallthru
        _
    $region6: #{tpu_custom_call.1} parent=1 // loop_footer
      %s31 = sadd.s32 1, %s27
    $region7: #{tpu_custom_call.1} parent=1 // loop_footer_branch
      %26 = sbr.rel target = $region3
    $region8: #{tpu_custom_call.1} parent=1 // loop_exit
      _
    %1977 = vsyncpa [#allocation4], 1
    %s1978 = scalar_lea.sflag [#allocation4], 1
    %1979 = vsyncpa %s1978, 1
    %1980 = vsyncpa [#allocation7], 1
    %1981 = vsyncpa [#allocation10], 1
    %1982 = vsyncpa [#allocation5], 1
    %s1983 = scalar_lea.sflag [#allocation5], 1
    %1984 = vsyncpa %s1983, 1

</llo_original>
